<compile_context>
chip_gen: v7x
topology: tpu7x:2x2x1
jax: 0.10.0
libtpu: 0.0.40
codegen_flags: <defaults>
</compile_context>

<pallas_src>
import jax
import jax.numpy as jnp
from jax import lax
from jax.experimental import pallas as pl
from jax.experimental.pallas import tpu as pltpu


def _round_up(x: int, m: int) -> int:
    return ((x + m - 1) // m) * m


# ----------------------------- Pallas kernel ------------------------------ #
def _make_rnn_mlp_kernel(num_layers: int, seq_len: int):
    """Kernel body (closure over static layer count / seq length)."""

    def kernel(*refs):
        idx = 0
        x_ref = refs[idx]; idx += 1                       # (T, TB, E_pad)
        layer_refs = []
        for _ in range(num_layers):
            layer_refs.append(refs[idx:idx + 3]); idx += 3  # w_ihT, w_hhT, bias(1,H)
        fc1_wT_ref, fc1_b_ref, fc2_wT_ref, fc2_b_ref = refs[idx:idx + 4]; idx += 4
        out_ref = refs[idx]; idx += 1                     # (T, TB, O_pad)
        buf = refs[idx]                                   # scratch (T, TB, H_pad)

        T, TB, H = buf.shape

        # ---- stacked vanilla RNN (tanh), h_0 = 0 per layer ----
        for layer in range(num_layers):
            w_ihT_ref, w_hhT_ref, bias_ref = layer_refs[layer]
            inp_ref = x_ref if layer == 0 else buf
            feat_in = inp_ref.shape[-1]

            # Hoisted input projection for ALL timesteps: one big MXU matmul.
            flat_in = inp_ref[...].reshape(T * TB, feat_in)
            proj = jnp.dot(flat_in, w_ihT_ref[...],
                           preferred_element_type=jnp.float32) + bias_ref[...]
            buf[...] = proj.reshape(T, TB, H)

            # Serial recurrence: only h @ W_hh^T + tanh on the critical path.
            w_hh = w_hhT_ref[...]                         # (H, H), vreg-resident
            h0 = jnp.zeros((TB, H), jnp.float32)

            def step(t, h, buf=buf, w_hh=w_hh):
                h_new = jnp.tanh(
                    buf[t] + jnp.dot(h, w_hh, preferred_element_type=jnp.float32))
                buf[t] = h_new                            # in place: read-before-write
                return h_new

            lax.fori_loop(0, seq_len, step, h0, unroll=True)

        # ---- classification head: fc2(ReLU(fc1(.))) for every timestep ----
        feats = buf[...].reshape(T * TB, H)
        hid = jnp.dot(feats, fc1_wT_ref[...],
                      preferred_element_type=jnp.float32) + fc1_b_ref[...]
        hid = jnp.maximum(hid, 0.0)                       # ReLU (head activation)
        logits = jnp.dot(hid, fc2_wT_ref[...],
                         preferred_element_type=jnp.float32) + fc2_b_ref[...]
        out_ref[...] = logits.reshape(T, TB, -1)

    return kernel


# ------------------------------ JAX wrapper -------------------------------- #
def rnn_model_forward(token_ids, params, *, num_layers, hidden_dim, batch_tile=8):
    """token_ids: int32 (B, T).  Returns logits (B, T, output_dim), float32."""
    f32 = jnp.float32
    emb_table = params["embedding"]                       # (V, E)
    B, T = token_ids.shape
    E = emb_table.shape[1]
    C = params["fc1_w"].shape[0]
    O = params["fc2_w"].shape[0]

    # Lane / sublane padding.
    E_pad = _round_up(E, 128)
    H_pad = _round_up(hidden_dim, 128)
    C_pad = _round_up(C, 128)
    O_pad = _round_up(O, 128)
    TB = batch_tile
    B_pad = _round_up(B, TB)
    nb = B_pad // TB

    # Embedding gather + time-major transpose + padding (glue, outside kernel).
    # TODO(synk): for long sequences, gather inside the kernel from a VMEM-resident
    # table (token ids via scalar prefetch) instead of materializing (T,B,E) in HBM.
    x = jnp.take(emb_table, token_ids, axis=0).astype(f32)    # (B, T, E)
    x = jnp.transpose(x, (1, 0, 2))                           # (T, B, E)
    x = jnp.pad(x, ((0, 0), (0, B_pad - B), (0, E_pad - E)))  # (T, B_pad, E_pad)

    def pad2(m, rows, cols):
        m = m.astype(f32)
        return jnp.pad(m, ((0, rows - m.shape[0]), (0, cols - m.shape[1])))

    def pad_bias(b, n):
        return jnp.pad(b.astype(f32), (0, n - b.shape[0])).reshape(1, n)

    def w_spec(shape):
        return pl.BlockSpec(shape, lambda b: (0, 0))          # weights resident

    inputs = [x]
    in_specs = [pl.BlockSpec((T, TB, E_pad), lambda b: (0, b, 0))]

    for layer in range(num_layers):
        in_pad = E_pad if layer == 0 else H_pad
        w_ihT = pad2(params[f"w_ih_{layer}"].T, in_pad, H_pad)         # (in_pad, H_pad)
        w_hhT = pad2(params[f"w_hh_{layer}"].T, H_pad, H_pad)          # (H_pad, H_pad)
        bias = pad_bias(params[f"b_ih_{layer}"] + params[f"b_hh_{layer}"], H_pad)
        inputs += [w_ihT, w_hhT, bias]
        in_specs += [w_spec((in_pad, H_pad)), w_spec((H_pad, H_pad)),
                     w_spec((1, H_pad))]

    fc1_wT = pad2(params["fc1_w"].T, H_pad, C_pad)
    fc1_b = pad_bias(params["fc1_b"], C_pad)
    fc2_wT = pad2(params["fc2_w"].T, C_pad, O_pad)
    fc2_b = pad_bias(params["fc2_b"], O_pad)
    inputs += [fc1_wT, fc1_b, fc2_wT, fc2_b]
    in_specs += [w_spec((H_pad, C_pad)), w_spec((1, C_pad)),
                 w_spec((C_pad, O_pad)), w_spec((1, O_pad))]

    kernel = _make_rnn_mlp_kernel(num_layers, T)

    out_tbo = pl.pallas_call(
        kernel,
        out_shape=jax.ShapeDtypeStruct((T, B_pad, O_pad), f32),
        grid_spec=pltpu.PrefetchScalarGridSpec(
            num_scalar_prefetch=0,
            grid=(nb,),
            in_specs=in_specs,
            out_specs=pl.BlockSpec((T, TB, O_pad), lambda b: (0, b, 0)),
            scratch_shapes=[pltpu.VMEM((T, TB, H_pad), f32)],
        ),
        compiler_params=pltpu.CompilerParams(
            dimension_semantics=("parallel",),
        ),
    )(*inputs)

    out = jnp.transpose(out_tbo, (1, 0, 2))               # (B_pad, T, O_pad)
    return out[:B, :, :O]                                 # strip padding


# -------------------------- pure-JAX reference ----------------------------- #
def rnn_model_reference(token_ids, params, *, num_layers, hidden_dim):
    emb = jnp.take(params["embedding"], token_ids, axis=0)   # (B, T, E)
    B, T, _ = emb.shape
    cur = emb
    for layer in range(num_layers):
        w_ih = params[f"w_ih_{layer}"]; w_hh = params[f"w_hh_{layer}"]
        b_ih = params[f"b_ih_{layer}"]; b_hh = params[f"b_hh_{layer}"]
        h = jnp.zeros((B, hidden_dim), jnp.float32)
        outs = []
        for t in range(T):
            h = jnp.tanh(cur[:, t, :] @ w_ih.T + b_ih + h @ w_hh.T + b_hh)
            outs.append(h)
        cur = jnp.stack(outs, axis=1)
    hid = jnp.maximum(cur @ params["fc1_w"].T + params["fc1_b"], 0.0)
    return hid @ params["fc2_w"].T + params["fc2_b"]


# --------------------------------- main ------------------------------------ #
if __name__ == "__main__":
    # Small config consistent with the module's __init__.
    vocab_size = 32
    embedding_dim = 16
    num_layers = 2
    hidden_dim = 32
    output_dim = 10
    classification_dim = 64
    pad_idx = 0          # vocab[PAD_TOKEN]
    B, T = 2, 8

    key = jax.random.PRNGKey(0)

    def nxt():
        global key
        key, sub = jax.random.split(key)
        return sub

    def uinit(shape, scale):
        return jax.random.uniform(nxt(), shape, jnp.float32, -scale, scale)

    params = {}
    emb = jax.random.normal(nxt(), (vocab_size, embedding_dim), jnp.float32)
    params["embedding"] = emb.at[pad_idx].set(0.0)        # padding_idx row is zero

    k = 1.0 / (hidden_dim ** 0.5)
    for layer in range(num_layers):
        in_dim = embedding_dim if layer == 0 else hidden_dim
        params[f"w_ih_{layer}"] = uinit((hidden_dim, in_dim), k)
        params[f"w_hh_{layer}"] = uinit((hidden_dim, hidden_dim), k)
        params[f"b_ih_{layer}"] = uinit((hidden_dim,), k)
        params[f"b_hh_{layer}"] = uinit((hidden_dim,), k)

    params["fc1_w"] = uinit((classification_dim, hidden_dim), 1.0 / (hidden_dim ** 0.5))
    params["fc1_b"] = uinit((classification_dim,), 1.0 / (hidden_dim ** 0.5))
    params["fc2_w"] = uinit((output_dim, classification_dim), 1.0 / (classification_dim ** 0.5))
    params["fc2_b"] = uinit((output_dim,), 1.0 / (classification_dim ** 0.5))

    token_ids = jax.random.randint(nxt(), (B, T), 0, vocab_size, jnp.int32)
    token_ids = token_ids.at[:, -2:].set(pad_idx)         # some padding at the end

    out = rnn_model_forward(token_ids, params,
                            num_layers=num_layers, hidden_dim=hidden_dim)
    out = jax.block_until_ready(out)

    ref = rnn_model_reference(token_ids, params,
                              num_layers=num_layers, hidden_dim=hidden_dim)
    assert out.shape == (B, T, output_dim)
    assert jnp.allclose(out, ref, atol=1e-4, rtol=1e-4), "mismatch vs reference"

    print("KERNEL_OK")
</pallas_src>

<mosaic_0001>
module attributes {stable_mosaic.version = 11 : i64} {
  func.func @kernel(%arg0: i32, %arg1: memref<8x8x128xf32, #tpu.memory_space<vmem>>, %arg2: memref<128x128xf32, #tpu.memory_space<vmem>>, %arg3: memref<128x128xf32, #tpu.memory_space<vmem>>, %arg4: memref<1x128xf32, #tpu.memory_space<vmem>>, %arg5: memref<128x128xf32, #tpu.memory_space<vmem>>, %arg6: memref<128x128xf32, #tpu.memory_space<vmem>>, %arg7: memref<1x128xf32, #tpu.memory_space<vmem>>, %arg8: memref<128x128xf32, #tpu.memory_space<vmem>>, %arg9: memref<1x128xf32, #tpu.memory_space<vmem>>, %arg10: memref<128x128xf32, #tpu.memory_space<vmem>>, %arg11: memref<1x128xf32, #tpu.memory_space<vmem>>, %arg12: memref<8x8x128xf32, #tpu.memory_space<vmem>>, %arg13: memref<8x8x128xf32, #tpu.memory_space<vmem>>) attributes {dimension_semantics = [#tpu.dimension_semantics<parallel>], iteration_bounds = array<i64: 1>, scalar_prefetch = 0 : i64, scratch_operands = 1 : i64, tpu.core_type = #tpu.core_type<tc>, window_params = [{transform_indices = @transform_0, window_bounds = array<i64: 8, 8, 128>}, {pipeline_mode = #tpu.pipeline_mode<synchronous>, transform_indices = @transform_1, window_bounds = array<i64: 128, 128>}, {pipeline_mode = #tpu.pipeline_mode<synchronous>, transform_indices = @transform_2, window_bounds = array<i64: 128, 128>}, {pipeline_mode = #tpu.pipeline_mode<synchronous>, transform_indices = @transform_3, window_bounds = array<i64: 1, 128>}, {pipeline_mode = #tpu.pipeline_mode<synchronous>, transform_indices = @transform_4, window_bounds = array<i64: 128, 128>}, {pipeline_mode = #tpu.pipeline_mode<synchronous>, transform_indices = @transform_5, window_bounds = array<i64: 128, 128>}, {pipeline_mode = #tpu.pipeline_mode<synchronous>, transform_indices = @transform_6, window_bounds = array<i64: 1, 128>}, {pipeline_mode = #tpu.pipeline_mode<synchronous>, transform_indices = @transform_7, window_bounds = array<i64: 128, 128>}, {pipeline_mode = #tpu.pipeline_mode<synchronous>, transform_indices = @transform_8, window_bounds = array<i64: 1, 128>}, {pipeline_mode = #tpu.pipeline_mode<synchronous>, transform_indices = @transform_9, window_bounds = array<i64: 128, 128>}, {pipeline_mode = #tpu.pipeline_mode<synchronous>, transform_indices = @transform_10, window_bounds = array<i64: 1, 128>}, {transform_indices = @transform_11, window_bounds = array<i64: 8, 8, 128>}]} {
    %c0 = arith.constant 0 : index
    %c0_0 = arith.constant 0 : index
    %c0_1 = arith.constant 0 : index
    %0 = vector.load %arg1[%c0, %c0_0, %c0_1] : memref<8x8x128xf32, #tpu.memory_space<vmem>>, vector<8x8x128xf32>
    %1 = vector.shape_cast %0 : vector<8x8x128xf32> to vector<64x128xf32>
    %c0_2 = arith.constant 0 : index
    %c0_3 = arith.constant 0 : index
    %2 = vector.load %arg2[%c0_2, %c0_3] : memref<128x128xf32, #tpu.memory_space<vmem>>, vector<128x128xf32>
    %cst = arith.constant dense<0.000000e+00> : vector<64x128xf32>
    %3 = tpu.matmul %1, %2, %cst {dimension_numbers = #tpu.dot_dimension_numbers<[1], [0], [0], [1], [0, 0, 1, 1], [], []>} : vector<64x128xf32>, vector<128x128xf32>, vector<64x128xf32> -> vector<64x128xf32>
    %c0_4 = arith.constant 0 : index
    %c0_5 = arith.constant 0 : index
    %4 = vector.load %arg4[%c0_4, %c0_5] : memref<1x128xf32, #tpu.memory_space<vmem>>, vector<1x128xf32>
    %5 = vector.broadcast %4 : vector<1x128xf32> to vector<64x128xf32>
    %6 = arith.addf %3, %5 : vector<64x128xf32>
    %7 = vector.shape_cast %6 : vector<64x128xf32> to vector<8x8x128xf32>
    %c0_6 = arith.constant 0 : index
    %c0_7 = arith.constant 0 : index
    %c0_8 = arith.constant 0 : index
    %8 = vector.load %arg13[%c0_6, %c0_7, %c0_8] : memref<8x8x128xf32, #tpu.memory_space<vmem>>, vector<8x8x128xf32>
    tpu.vector_store %arg13[%c0_6, %c0_7, %c0_8], %7 {strides = array<i32>} : memref<8x8x128xf32, #tpu.memory_space<vmem>>, vector<8x8x128xf32>,
    %c0_9 = arith.constant 0 : index
    %c0_10 = arith.constant 0 : index
    %9 = vector.load %arg3[%c0_9, %c0_10] : memref<128x128xf32, #tpu.memory_space<vmem>>, vector<128x128xf32>
    %cst_11 = arith.constant 0.000000e+00 : f32
    %10 = vector.broadcast %cst_11 : f32 to vector<8x128xf32>
    %c0_i32 = arith.constant 0 : i32
    %11 = arith.index_cast %c0_i32 : i32 to index
    %c0_12 = arith.constant 0 : index
    %c0_13 = arith.constant 0 : index
    %12 = vector.load %arg13[%11, %c0_12, %c0_13] : memref<8x8x128xf32, #tpu.memory_space<vmem>>, vector<1x8x128xf32>
    %13 = vector.shape_cast %12 : vector<1x8x128xf32> to vector<8x128xf32>
    %cst_14 = arith.constant dense<0.000000e+00> : vector<8x128xf32>
    %14 = tpu.matmul %10, %9, %cst_14 {dimension_numbers = #tpu.dot_dimension_numbers<[1], [0], [0], [1], [0, 0, 1, 1], [], []>} : vector<8x128xf32>, vector<128x128xf32>, vector<8x128xf32> -> vector<8x128xf32>
    %15 = arith.addf %13, %14 : vector<8x128xf32>
    %16 = math.tanh %15 : vector<8x128xf32>
    %17 = arith.index_cast %c0_i32 : i32 to index
    %c0_15 = arith.constant 0 : index
    %c0_16 = arith.constant 0 : index
    %18 = vector.load %arg13[%17, %c0_15, %c0_16] : memref<8x8x128xf32, #tpu.memory_space<vmem>>, vector<1x8x128xf32>
    %19 = vector.shape_cast %18 : vector<1x8x128xf32> to vector<8x128xf32>
    %20 = vector.shape_cast %16 : vector<8x128xf32> to vector<1x8x128xf32>
    tpu.vector_store %arg13[%17, %c0_15, %c0_16], %20 {strides = array<i32>} : memref<8x8x128xf32, #tpu.memory_space<vmem>>, vector<1x8x128xf32>,
    %c1_i32 = arith.constant 1 : i32
    %21 = arith.index_cast %c1_i32 : i32 to index
    %c0_17 = arith.constant 0 : index
    %c0_18 = arith.constant 0 : index
    %22 = vector.load %arg13[%21, %c0_17, %c0_18] : memref<8x8x128xf32, #tpu.memory_space<vmem>>, vector<1x8x128xf32>
    %23 = vector.shape_cast %22 : vector<1x8x128xf32> to vector<8x128xf32>
    %cst_19 = arith.constant dense<0.000000e+00> : vector<8x128xf32>
    %24 = tpu.matmul %16, %9, %cst_19 {dimension_numbers = #tpu.dot_dimension_numbers<[1], [0], [0], [1], [0, 0, 1, 1], [], []>} : vector<8x128xf32>, vector<128x128xf32>, vector<8x128xf32> -> vector<8x128xf32>
    %25 = arith.addf %23, %24 : vector<8x128xf32>
    %26 = math.tanh %25 : vector<8x128xf32>
    %27 = arith.index_cast %c1_i32 : i32 to index
    %c0_20 = arith.constant 0 : index
    %c0_21 = arith.constant 0 : index
    %28 = vector.load %arg13[%27, %c0_20, %c0_21] : memref<8x8x128xf32, #tpu.memory_space<vmem>>, vector<1x8x128xf32>
    %29 = vector.shape_cast %28 : vector<1x8x128xf32> to vector<8x128xf32>
    %30 = vector.shape_cast %26 : vector<8x128xf32> to vector<1x8x128xf32>
    tpu.vector_store %arg13[%27, %c0_20, %c0_21], %30 {strides = array<i32>} : memref<8x8x128xf32, #tpu.memory_space<vmem>>, vector<1x8x128xf32>,
    %c2_i32 = arith.constant 2 : i32
    %31 = arith.index_cast %c2_i32 : i32 to index
    %c0_22 = arith.constant 0 : index
    %c0_23 = arith.constant 0 : index
    %32 = vector.load %arg13[%31, %c0_22, %c0_23] : memref<8x8x128xf32, #tpu.memory_space<vmem>>, vector<1x8x128xf32>
    %33 = vector.shape_cast %32 : vector<1x8x128xf32> to vector<8x128xf32>
    %cst_24 = arith.constant dense<0.000000e+00> : vector<8x128xf32>
    %34 = tpu.matmul %26, %9, %cst_24 {dimension_numbers = #tpu.dot_dimension_numbers<[1], [0], [0], [1], [0, 0, 1, 1], [], []>} : vector<8x128xf32>, vector<128x128xf32>, vector<8x128xf32> -> vector<8x128xf32>
    %35 = arith.addf %33, %34 : vector<8x128xf32>
    %36 = math.tanh %35 : vector<8x128xf32>
    %37 = arith.index_cast %c2_i32 : i32 to index
    %c0_25 = arith.constant 0 : index
    %c0_26 = arith.constant 0 : index
    %38 = vector.load %arg13[%37, %c0_25, %c0_26] : memref<8x8x128xf32, #tpu.memory_space<vmem>>, vector<1x8x128xf32>
    %39 = vector.shape_cast %38 : vector<1x8x128xf32> to vector<8x128xf32>
    %40 = vector.shape_cast %36 : vector<8x128xf32> to vector<1x8x128xf32>
    tpu.vector_store %arg13[%37, %c0_25, %c0_26], %40 {strides = array<i32>} : memref<8x8x128xf32, #tpu.memory_space<vmem>>, vector<1x8x128xf32>,
    %c3_i32 = arith.constant 3 : i32
    %41 = arith.index_cast %c3_i32 : i32 to index
    %c0_27 = arith.constant 0 : index
    %c0_28 = arith.constant 0 : index
    %42 = vector.load %arg13[%41, %c0_27, %c0_28] : memref<8x8x128xf32, #tpu.memory_space<vmem>>, vector<1x8x128xf32>
    %43 = vector.shape_cast %42 : vector<1x8x128xf32> to vector<8x128xf32>
    %cst_29 = arith.constant dense<0.000000e+00> : vector<8x128xf32>
    %44 = tpu.matmul %36, %9, %cst_29 {dimension_numbers = #tpu.dot_dimension_numbers<[1], [0], [0], [1], [0, 0, 1, 1], [], []>} : vector<8x128xf32>, vector<128x128xf32>, vector<8x128xf32> -> vector<8x128xf32>
    %45 = arith.addf %43, %44 : vector<8x128xf32>
    %46 = math.tanh %45 : vector<8x128xf32>
    %47 = arith.index_cast %c3_i32 : i32 to index
    %c0_30 = arith.constant 0 : index
    %c0_31 = arith.constant 0 : index
    %48 = vector.load %arg13[%47, %c0_30, %c0_31] : memref<8x8x128xf32, #tpu.memory_space<vmem>>, vector<1x8x128xf32>
    %49 = vector.shape_cast %48 : vector<1x8x128xf32> to vector<8x128xf32>
    %50 = vector.shape_cast %46 : vector<8x128xf32> to vector<1x8x128xf32>
    tpu.vector_store %arg13[%47, %c0_30, %c0_31], %50 {strides = array<i32>} : memref<8x8x128xf32, #tpu.memory_space<vmem>>, vector<1x8x128xf32>,
    %c4_i32 = arith.constant 4 : i32
    %51 = arith.index_cast %c4_i32 : i32 to index
    %c0_32 = arith.constant 0 : index
    %c0_33 = arith.constant 0 : index
    %52 = vector.load %arg13[%51, %c0_32, %c0_33] : memref<8x8x128xf32, #tpu.memory_space<vmem>>, vector<1x8x128xf32>
    %53 = vector.shape_cast %52 : vector<1x8x128xf32> to vector<8x128xf32>
    %cst_34 = arith.constant dense<0.000000e+00> : vector<8x128xf32>
    %54 = tpu.matmul %46, %9, %cst_34 {dimension_numbers = #tpu.dot_dimension_numbers<[1], [0], [0], [1], [0, 0, 1, 1], [], []>} : vector<8x128xf32>, vector<128x128xf32>, vector<8x128xf32> -> vector<8x128xf32>
    %55 = arith.addf %53, %54 : vector<8x128xf32>
    %56 = math.tanh %55 : vector<8x128xf32>
    %57 = arith.index_cast %c4_i32 : i32 to index
    %c0_35 = arith.constant 0 : index
    %c0_36 = arith.constant 0 : index
    %58 = vector.load %arg13[%57, %c0_35, %c0_36] : memref<8x8x128xf32, #tpu.memory_space<vmem>>, vector<1x8x128xf32>
    %59 = vector.shape_cast %58 : vector<1x8x128xf32> to vector<8x128xf32>
    %60 = vector.shape_cast %56 : vector<8x128xf32> to vector<1x8x128xf32>
    tpu.vector_store %arg13[%57, %c0_35, %c0_36], %60 {strides = array<i32>} : memref<8x8x128xf32, #tpu.memory_space<vmem>>, vector<1x8x128xf32>,
    %c5_i32 = arith.constant 5 : i32
    %61 = arith.index_cast %c5_i32 : i32 to index
    %c0_37 = arith.constant 0 : index
    %c0_38 = arith.constant 0 : index
    %62 = vector.load %arg13[%61, %c0_37, %c0_38] : memref<8x8x128xf32, #tpu.memory_space<vmem>>, vector<1x8x128xf32>
    %63 = vector.shape_cast %62 : vector<1x8x128xf32> to vector<8x128xf32>
    %cst_39 = arith.constant dense<0.000000e+00> : vector<8x128xf32>
    %64 = tpu.matmul %56, %9, %cst_39 {dimension_numbers = #tpu.dot_dimension_numbers<[1], [0], [0], [1], [0, 0, 1, 1], [], []>} : vector<8x128xf32>, vector<128x128xf32>, vector<8x128xf32> -> vector<8x128xf32>
    %65 = arith.addf %63, %64 : vector<8x128xf32>
    %66 = math.tanh %65 : vector<8x128xf32>
    %67 = arith.index_cast %c5_i32 : i32 to index
    %c0_40 = arith.constant 0 : index
    %c0_41 = arith.constant 0 : index
    %68 = vector.load %arg13[%67, %c0_40, %c0_41] : memref<8x8x128xf32, #tpu.memory_space<vmem>>, vector<1x8x128xf32>
    %69 = vector.shape_cast %68 : vector<1x8x128xf32> to vector<8x128xf32>
    %70 = vector.shape_cast %66 : vector<8x128xf32> to vector<1x8x128xf32>
    tpu.vector_store %arg13[%67, %c0_40, %c0_41], %70 {strides = array<i32>} : memref<8x8x128xf32, #tpu.memory_space<vmem>>, vector<1x8x128xf32>,
    %c6_i32 = arith.constant 6 : i32
    %71 = arith.index_cast %c6_i32 : i32 to index
    %c0_42 = arith.constant 0 : index
    %c0_43 = arith.constant 0 : index
    %72 = vector.load %arg13[%71, %c0_42, %c0_43] : memref<8x8x128xf32, #tpu.memory_space<vmem>>, vector<1x8x128xf32>
    %73 = vector.shape_cast %72 : vector<1x8x128xf32> to vector<8x128xf32>
    %cst_44 = arith.constant dense<0.000000e+00> : vector<8x128xf32>
    %74 = tpu.matmul %66, %9, %cst_44 {dimension_numbers = #tpu.dot_dimension_numbers<[1], [0], [0], [1], [0, 0, 1, 1], [], []>} : vector<8x128xf32>, vector<128x128xf32>, vector<8x128xf32> -> vector<8x128xf32>
    %75 = arith.addf %73, %74 : vector<8x128xf32>
    %76 = math.tanh %75 : vector<8x128xf32>
    %77 = arith.index_cast %c6_i32 : i32 to index
    %c0_45 = arith.constant 0 : index
    %c0_46 = arith.constant 0 : index
    %78 = vector.load %arg13[%77, %c0_45, %c0_46] : memref<8x8x128xf32, #tpu.memory_space<vmem>>, vector<1x8x128xf32>
    %79 = vector.shape_cast %78 : vector<1x8x128xf32> to vector<8x128xf32>
    %80 = vector.shape_cast %76 : vector<8x128xf32> to vector<1x8x128xf32>
    tpu.vector_store %arg13[%77, %c0_45, %c0_46], %80 {strides = array<i32>} : memref<8x8x128xf32, #tpu.memory_space<vmem>>, vector<1x8x128xf32>,
    %c7_i32 = arith.constant 7 : i32
    %81 = arith.index_cast %c7_i32 : i32 to index
    %c0_47 = arith.constant 0 : index
    %c0_48 = arith.constant 0 : index
    %82 = vector.load %arg13[%81, %c0_47, %c0_48] : memref<8x8x128xf32, #tpu.memory_space<vmem>>, vector<1x8x128xf32>
    %83 = vector.shape_cast %82 : vector<1x8x128xf32> to vector<8x128xf32>
    %cst_49 = arith.constant dense<0.000000e+00> : vector<8x128xf32>
    %84 = tpu.matmul %76, %9, %cst_49 {dimension_numbers = #tpu.dot_dimension_numbers<[1], [0], [0], [1], [0, 0, 1, 1], [], []>} : vector<8x128xf32>, vector<128x128xf32>, vector<8x128xf32> -> vector<8x128xf32>
    %85 = arith.addf %83, %84 : vector<8x128xf32>
    %86 = math.tanh %85 : vector<8x128xf32>
    %87 = arith.index_cast %c7_i32 : i32 to index
    %c0_50 = arith.constant 0 : index
    %c0_51 = arith.constant 0 : index
    %88 = vector.load %arg13[%87, %c0_50, %c0_51] : memref<8x8x128xf32, #tpu.memory_space<vmem>>, vector<1x8x128xf32>
    %89 = vector.shape_cast %88 : vector<1x8x128xf32> to vector<8x128xf32>
    %90 = vector.shape_cast %86 : vector<8x128xf32> to vector<1x8x128xf32>
    tpu.vector_store %arg13[%87, %c0_50, %c0_51], %90 {strides = array<i32>} : memref<8x8x128xf32, #tpu.memory_space<vmem>>, vector<1x8x128xf32>,
    %c8_i32 = arith.constant 8 : i32
    %c0_52 = arith.constant 0 : index
    %c0_53 = arith.constant 0 : index
    %c0_54 = arith.constant 0 : index
    %91 = vector.load %arg13[%c0_52, %c0_53, %c0_54] : memref<8x8x128xf32, #tpu.memory_space<vmem>>, vector<8x8x128xf32>
    %92 = vector.shape_cast %91 : vector<8x8x128xf32> to vector<64x128xf32>
    %c0_55 = arith.constant 0 : index
    %c0_56 = arith.constant 0 : index
    %93 = vector.load %arg5[%c0_55, %c0_56] : memref<128x128xf32, #tpu.memory_space<vmem>>, vector<128x128xf32>
    %cst_57 = arith.constant dense<0.000000e+00> : vector<64x128xf32>
    %94 = tpu.matmul %92, %93, %cst_57 {dimension_numbers = #tpu.dot_dimension_numbers<[1], [0], [0], [1], [0, 0, 1, 1], [], []>} : vector<64x128xf32>, vector<128x128xf32>, vector<64x128xf32> -> vector<64x128xf32>
    %c0_58 = arith.constant 0 : index
    %c0_59 = arith.constant 0 : index
    %95 = vector.load %arg7[%c0_58, %c0_59] : memref<1x128xf32, #tpu.memory_space<vmem>>, vector<1x128xf32>
    %96 = vector.broadcast %95 : vector<1x128xf32> to vector<64x128xf32>
    %97 = arith.addf %94, %96 : vector<64x128xf32>
    %98 = vector.shape_cast %97 : vector<64x128xf32> to vector<8x8x128xf32>
    %c0_60 = arith.constant 0 : index
    %c0_61 = arith.constant 0 : index
    %c0_62 = arith.constant 0 : index
    %99 = vector.load %arg13[%c0_60, %c0_61, %c0_62] : memref<8x8x128xf32, #tpu.memory_space<vmem>>, vector<8x8x128xf32>
    tpu.vector_store %arg13[%c0_60, %c0_61, %c0_62], %98 {strides = array<i32>} : memref<8x8x128xf32, #tpu.memory_space<vmem>>, vector<8x8x128xf32>,
    %c0_63 = arith.constant 0 : index
    %c0_64 = arith.constant 0 : index
    %100 = vector.load %arg6[%c0_63, %c0_64] : memref<128x128xf32, #tpu.memory_space<vmem>>, vector<128x128xf32>
    %cst_65 = arith.constant 0.000000e+00 : f32
    %101 = vector.broadcast %cst_65 : f32 to vector<8x128xf32>
    %c0_i32_66 = arith.constant 0 : i32
    %102 = arith.index_cast %c0_i32_66 : i32 to index
    %c0_67 = arith.constant 0 : index
    %c0_68 = arith.constant 0 : index
    %103 = vector.load %arg13[%102, %c0_67, %c0_68] : memref<8x8x128xf32, #tpu.memory_space<vmem>>, vector<1x8x128xf32>
    %104 = vector.shape_cast %103 : vector<1x8x128xf32> to vector<8x128xf32>
    %cst_69 = arith.constant dense<0.000000e+00> : vector<8x128xf32>
    %105 = tpu.matmul %101, %100, %cst_69 {dimension_numbers = #tpu.dot_dimension_numbers<[1], [0], [0], [1], [0, 0, 1, 1], [], []>} : vector<8x128xf32>, vector<128x128xf32>, vector<8x128xf32> -> vector<8x128xf32>
    %106 = arith.addf %104, %105 : vector<8x128xf32>
    %107 = math.tanh %106 : vector<8x128xf32>
    %108 = arith.index_cast %c0_i32_66 : i32 to index
    %c0_70 = arith.constant 0 : index
    %c0_71 = arith.constant 0 : index
    %109 = vector.load %arg13[%108, %c0_70, %c0_71] : memref<8x8x128xf32, #tpu.memory_space<vmem>>, vector<1x8x128xf32>
    %110 = vector.shape_cast %109 : vector<1x8x128xf32> to vector<8x128xf32>
    %111 = vector.shape_cast %107 : vector<8x128xf32> to vector<1x8x128xf32>
    tpu.vector_store %arg13[%108, %c0_70, %c0_71], %111 {strides = array<i32>} : memref<8x8x128xf32, #tpu.memory_space<vmem>>, vector<1x8x128xf32>,
    %c1_i32_72 = arith.constant 1 : i32
    %112 = arith.index_cast %c1_i32_72 : i32 to index
    %c0_73 = arith.constant 0 : index
    %c0_74 = arith.constant 0 : index
    %113 = vector.load %arg13[%112, %c0_73, %c0_74] : memref<8x8x128xf32, #tpu.memory_space<vmem>>, vector<1x8x128xf32>
    %114 = vector.shape_cast %113 : vector<1x8x128xf32> to vector<8x128xf32>
    %cst_75 = arith.constant dense<0.000000e+00> : vector<8x128xf32>
    %115 = tpu.matmul %107, %100, %cst_75 {dimension_numbers = #tpu.dot_dimension_numbers<[1], [0], [0], [1], [0, 0, 1, 1], [], []>} : vector<8x128xf32>, vector<128x128xf32>, vector<8x128xf32> -> vector<8x128xf32>
    %116 = arith.addf %114, %115 : vector<8x128xf32>
    %117 = math.tanh %116 : vector<8x128xf32>
    %118 = arith.index_cast %c1_i32_72 : i32 to index
    %c0_76 = arith.constant 0 : index
    %c0_77 = arith.constant 0 : index
    %119 = vector.load %arg13[%118, %c0_76, %c0_77] : memref<8x8x128xf32, #tpu.memory_space<vmem>>, vector<1x8x128xf32>
    %120 = vector.shape_cast %119 : vector<1x8x128xf32> to vector<8x128xf32>
    %121 = vector.shape_cast %117 : vector<8x128xf32> to vector<1x8x128xf32>
    tpu.vector_store %arg13[%118, %c0_76, %c0_77], %121 {strides = array<i32>} : memref<8x8x128xf32, #tpu.memory_space<vmem>>, vector<1x8x128xf32>,
    %c2_i32_78 = arith.constant 2 : i32
    %122 = arith.index_cast %c2_i32_78 : i32 to index
    %c0_79 = arith.constant 0 : index
    %c0_80 = arith.constant 0 : index
    %123 = vector.load %arg13[%122, %c0_79, %c0_80] : memref<8x8x128xf32, #tpu.memory_space<vmem>>, vector<1x8x128xf32>
    %124 = vector.shape_cast %123 : vector<1x8x128xf32> to vector<8x128xf32>
    %cst_81 = arith.constant dense<0.000000e+00> : vector<8x128xf32>
    %125 = tpu.matmul %117, %100, %cst_81 {dimension_numbers = #tpu.dot_dimension_numbers<[1], [0], [0], [1], [0, 0, 1, 1], [], []>} : vector<8x128xf32>, vector<128x128xf32>, vector<8x128xf32> -> vector<8x128xf32>
    %126 = arith.addf %124, %125 : vector<8x128xf32>
    %127 = math.tanh %126 : vector<8x128xf32>
    %128 = arith.index_cast %c2_i32_78 : i32 to index
    %c0_82 = arith.constant 0 : index
    %c0_83 = arith.constant 0 : index
    %129 = vector.load %arg13[%128, %c0_82, %c0_83] : memref<8x8x128xf32, #tpu.memory_space<vmem>>, vector<1x8x128xf32>
    %130 = vector.shape_cast %129 : vector<1x8x128xf32> to vector<8x128xf32>
    %131 = vector.shape_cast %127 : vector<8x128xf32> to vector<1x8x128xf32>
    tpu.vector_store %arg13[%128, %c0_82, %c0_83], %131 {strides = array<i32>} : memref<8x8x128xf32, #tpu.memory_space<vmem>>, vector<1x8x128xf32>,
    %c3_i32_84 = arith.constant 3 : i32
    %132 = arith.index_cast %c3_i32_84 : i32 to index
    %c0_85 = arith.constant 0 : index
    %c0_86 = arith.constant 0 : index
    %133 = vector.load %arg13[%132, %c0_85, %c0_86] : memref<8x8x128xf32, #tpu.memory_space<vmem>>, vector<1x8x128xf32>
    %134 = vector.shape_cast %133 : vector<1x8x128xf32> to vector<8x128xf32>
    %cst_87 = arith.constant dense<0.000000e+00> : vector<8x128xf32>
    %135 = tpu.matmul %127, %100, %cst_87 {dimension_numbers = #tpu.dot_dimension_numbers<[1], [0], [0], [1], [0, 0, 1, 1], [], []>} : vector<8x128xf32>, vector<128x128xf32>, vector<8x128xf32> -> vector<8x128xf32>
    %136 = arith.addf %134, %135 : vector<8x128xf32>
    %137 = math.tanh %136 : vector<8x128xf32>
    %138 = arith.index_cast %c3_i32_84 : i32 to index
    %c0_88 = arith.constant 0 : index
    %c0_89 = arith.constant 0 : index
    %139 = vector.load %arg13[%138, %c0_88, %c0_89] : memref<8x8x128xf32, #tpu.memory_space<vmem>>, vector<1x8x128xf32>
    %140 = vector.shape_cast %139 : vector<1x8x128xf32> to vector<8x128xf32>
    %141 = vector.shape_cast %137 : vector<8x128xf32> to vector<1x8x128xf32>
    tpu.vector_store %arg13[%138, %c0_88, %c0_89], %141 {strides = array<i32>} : memref<8x8x128xf32, #tpu.memory_space<vmem>>, vector<1x8x128xf32>,
    %c4_i32_90 = arith.constant 4 : i32
    %142 = arith.index_cast %c4_i32_90 : i32 to index
    %c0_91 = arith.constant 0 : index
    %c0_92 = arith.constant 0 : index
    %143 = vector.load %arg13[%142, %c0_91, %c0_92] : memref<8x8x128xf32, #tpu.memory_space<vmem>>, vector<1x8x128xf32>
    %144 = vector.shape_cast %143 : vector<1x8x128xf32> to vector<8x128xf32>
    %cst_93 = arith.constant dense<0.000000e+00> : vector<8x128xf32>
    %145 = tpu.matmul %137, %100, %cst_93 {dimension_numbers = #tpu.dot_dimension_numbers<[1], [0], [0], [1], [0, 0, 1, 1], [], []>} : vector<8x128xf32>, vector<128x128xf32>, vector<8x128xf32> -> vector<8x128xf32>
    %146 = arith.addf %144, %145 : vector<8x128xf32>
    %147 = math.tanh %146 : vector<8x128xf32>
    %148 = arith.index_cast %c4_i32_90 : i32 to index
    %c0_94 = arith.constant 0 : index
    %c0_95 = arith.constant 0 : index
    %149 = vector.load %arg13[%148, %c0_94, %c0_95] : memref<8x8x128xf32, #tpu.memory_space<vmem>>, vector<1x8x128xf32>
    %150 = vector.shape_cast %149 : vector<1x8x128xf32> to vector<8x128xf32>
    %151 = vector.shape_cast %147 : vector<8x128xf32> to vector<1x8x128xf32>
    tpu.vector_store %arg13[%148, %c0_94, %c0_95], %151 {strides = array<i32>} : memref<8x8x128xf32, #tpu.memory_space<vmem>>, vector<1x8x128xf32>,
    %c5_i32_96 = arith.constant 5 : i32
    %152 = arith.index_cast %c5_i32_96 : i32 to index
    %c0_97 = arith.constant 0 : index
    %c0_98 = arith.constant 0 : index
    %153 = vector.load %arg13[%152, %c0_97, %c0_98] : memref<8x8x128xf32, #tpu.memory_space<vmem>>, vector<1x8x128xf32>
    %154 = vector.shape_cast %153 : vector<1x8x128xf32> to vector<8x128xf32>
    %cst_99 = arith.constant dense<0.000000e+00> : vector<8x128xf32>
    %155 = tpu.matmul %147, %100, %cst_99 {dimension_numbers = #tpu.dot_dimension_numbers<[1], [0], [0], [1], [0, 0, 1, 1], [], []>} : vector<8x128xf32>, vector<128x128xf32>, vector<8x128xf32> -> vector<8x128xf32>
    %156 = arith.addf %154, %155 : vector<8x128xf32>
    %157 = math.tanh %156 : vector<8x128xf32>
    %158 = arith.index_cast %c5_i32_96 : i32 to index
    %c0_100 = arith.constant 0 : index
    %c0_101 = arith.constant 0 : index
    %159 = vector.load %arg13[%158, %c0_100, %c0_101] : memref<8x8x128xf32, #tpu.memory_space<vmem>>, vector<1x8x128xf32>
    %160 = vector.shape_cast %159 : vector<1x8x128xf32> to vector<8x128xf32>
    %161 = vector.shape_cast %157 : vector<8x128xf32> to vector<1x8x128xf32>
    tpu.vector_store %arg13[%158, %c0_100, %c0_101], %161 {strides = array<i32>} : memref<8x8x128xf32, #tpu.memory_space<vmem>>, vector<1x8x128xf32>,
    %c6_i32_102 = arith.constant 6 : i32
    %162 = arith.index_cast %c6_i32_102 : i32 to index
    %c0_103 = arith.constant 0 : index
    %c0_104 = arith.constant 0 : index
    %163 = vector.load %arg13[%162, %c0_103, %c0_104] : memref<8x8x128xf32, #tpu.memory_space<vmem>>, vector<1x8x128xf32>
    %164 = vector.shape_cast %163 : vector<1x8x128xf32> to vector<8x128xf32>
    %cst_105 = arith.constant dense<0.000000e+00> : vector<8x128xf32>
    %165 = tpu.matmul %157, %100, %cst_105 {dimension_numbers = #tpu.dot_dimension_numbers<[1], [0], [0], [1], [0, 0, 1, 1], [], []>} : vector<8x128xf32>, vector<128x128xf32>, vector<8x128xf32> -> vector<8x128xf32>
    %166 = arith.addf %164, %165 : vector<8x128xf32>
    %167 = math.tanh %166 : vector<8x128xf32>
    %168 = arith.index_cast %c6_i32_102 : i32 to index
    %c0_106 = arith.constant 0 : index
    %c0_107 = arith.constant 0 : index
    %169 = vector.load %arg13[%168, %c0_106, %c0_107] : memref<8x8x128xf32, #tpu.memory_space<vmem>>, vector<1x8x128xf32>
    %170 = vector.shape_cast %169 : vector<1x8x128xf32> to vector<8x128xf32>
    %171 = vector.shape_cast %167 : vector<8x128xf32> to vector<1x8x128xf32>
    tpu.vector_store %arg13[%168, %c0_106, %c0_107], %171 {strides = array<i32>} : memref<8x8x128xf32, #tpu.memory_space<vmem>>, vector<1x8x128xf32>,
    %c7_i32_108 = arith.constant 7 : i32
    %172 = arith.index_cast %c7_i32_108 : i32 to index
    %c0_109 = arith.constant 0 : index
    %c0_110 = arith.constant 0 : index
    %173 = vector.load %arg13[%172, %c0_109, %c0_110] : memref<8x8x128xf32, #tpu.memory_space<vmem>>, vector<1x8x128xf32>
    %174 = vector.shape_cast %173 : vector<1x8x128xf32> to vector<8x128xf32>
    %cst_111 = arith.constant dense<0.000000e+00> : vector<8x128xf32>
    %175 = tpu.matmul %167, %100, %cst_111 {dimension_numbers = #tpu.dot_dimension_numbers<[1], [0], [0], [1], [0, 0, 1, 1], [], []>} : vector<8x128xf32>, vector<128x128xf32>, vector<8x128xf32> -> vector<8x128xf32>
    %176 = arith.addf %174, %175 : vector<8x128xf32>
    %177 = math.tanh %176 : vector<8x128xf32>
    %178 = arith.index_cast %c7_i32_108 : i32 to index
    %c0_112 = arith.constant 0 : index
    %c0_113 = arith.constant 0 : index
    %179 = vector.load %arg13[%178, %c0_112, %c0_113] : memref<8x8x128xf32, #tpu.memory_space<vmem>>, vector<1x8x128xf32>
    %180 = vector.shape_cast %179 : vector<1x8x128xf32> to vector<8x128xf32>
    %181 = vector.shape_cast %177 : vector<8x128xf32> to vector<1x8x128xf32>
    tpu.vector_store %arg13[%178, %c0_112, %c0_113], %181 {strides = array<i32>} : memref<8x8x128xf32, #tpu.memory_space<vmem>>, vector<1x8x128xf32>,
    %c8_i32_114 = arith.constant 8 : i32
    %c0_115 = arith.constant 0 : index
    %c0_116 = arith.constant 0 : index
    %c0_117 = arith.constant 0 : index
    %182 = vector.load %arg13[%c0_115, %c0_116, %c0_117] : memref<8x8x128xf32, #tpu.memory_space<vmem>>, vector<8x8x128xf32>
    %183 = vector.shape_cast %182 : vector<8x8x128xf32> to vector<64x128xf32>
    %c0_118 = arith.constant 0 : index
    %c0_119 = arith.constant 0 : index
    %184 = vector.load %arg8[%c0_118, %c0_119] : memref<128x128xf32, #tpu.memory_space<vmem>>, vector<128x128xf32>
    %cst_120 = arith.constant dense<0.000000e+00> : vector<64x128xf32>
    %185 = tpu.matmul %183, %184, %cst_120 {dimension_numbers = #tpu.dot_dimension_numbers<[1], [0], [0], [1], [0, 0, 1, 1], [], []>} : vector<64x128xf32>, vector<128x128xf32>, vector<64x128xf32> -> vector<64x128xf32>
    %c0_121 = arith.constant 0 : index
    %c0_122 = arith.constant 0 : index
    %186 = vector.load %arg9[%c0_121, %c0_122] : memref<1x128xf32, #tpu.memory_space<vmem>>, vector<1x128xf32>
    %187 = vector.broadcast %186 : vector<1x128xf32> to vector<64x128xf32>
    %188 = arith.addf %185, %187 : vector<64x128xf32>
    %cst_123 = arith.constant 0.000000e+00 : f32
    %189 = vector.broadcast %cst_123 : f32 to vector<64x128xf32>
    %190 = arith.maximumf %188, %189 : vector<64x128xf32>
    %c0_124 = arith.constant 0 : index
    %c0_125 = arith.constant 0 : index
    %191 = vector.load %arg10[%c0_124, %c0_125] : memref<128x128xf32, #tpu.memory_space<vmem>>, vector<128x128xf32>
    %cst_126 = arith.constant dense<0.000000e+00> : vector<64x128xf32>
    %192 = tpu.matmul %190, %191, %cst_126 {dimension_numbers = #tpu.dot_dimension_numbers<[1], [0], [0], [1], [0, 0, 1, 1], [], []>} : vector<64x128xf32>, vector<128x128xf32>, vector<64x128xf32> -> vector<64x128xf32>
    %c0_127 = arith.constant 0 : index
    %c0_128 = arith.constant 0 : index
    %193 = vector.load %arg11[%c0_127, %c0_128] : memref<1x128xf32, #tpu.memory_space<vmem>>, vector<1x128xf32>
    %194 = vector.broadcast %193 : vector<1x128xf32> to vector<64x128xf32>
    %195 = arith.addf %192, %194 : vector<64x128xf32>
    %196 = vector.shape_cast %195 : vector<64x128xf32> to vector<8x8x128xf32>
    %c0_129 = arith.constant 0 : index
    %c0_130 = arith.constant 0 : index
    %c0_131 = arith.constant 0 : index
    %197 = vector.load %arg12[%c0_129, %c0_130, %c0_131] : memref<8x8x128xf32, #tpu.memory_space<vmem>>, vector<8x8x128xf32>
    tpu.vector_store %arg12[%c0_129, %c0_130, %c0_131], %196 {strides = array<i32>} : memref<8x8x128xf32, #tpu.memory_space<vmem>>, vector<8x8x128xf32>,
    return
  }
  func.func @transform_0(%arg0: i32) -> (i32, i32, i32) {
    %c0_i32 = arith.constant 0 : i32
    %c0_i32_0 = arith.constant 0 : i32
    %c0_i32_1 = arith.constant 0 : i32
    return %c0_i32, %arg0, %c0_i32_0 : i32, i32, i32
  }
  func.func @transform_1(%arg0: i32) -> (i32, i32) {
    %c0_i32 = arith.constant 0 : i32
    %c0_i32_0 = arith.constant 0 : i32
    %c0_i32_1 = arith.constant 0 : i32
    return %c0_i32, %c0_i32_0 : i32, i32
  }
  func.func @transform_2(%arg0: i32) -> (i32, i32) {
    %c0_i32 = arith.constant 0 : i32
    %c0_i32_0 = arith.constant 0 : i32
    %c0_i32_1 = arith.constant 0 : i32
    return %c0_i32, %c0_i32_0 : i32, i32
  }
  func.func @transform_3(%arg0: i32) -> (i32, i32) {
    %c0_i32 = arith.constant 0 : i32
    %c0_i32_0 = arith.constant 0 : i32
    %c0_i32_1 = arith.constant 0 : i32
    return %c0_i32, %c0_i32_0 : i32, i32
  }
  func.func @transform_4(%arg0: i32) -> (i32, i32) {
    %c0_i32 = arith.constant 0 : i32
    %c0_i32_0 = arith.constant 0 : i32
    %c0_i32_1 = arith.constant 0 : i32
    return %c0_i32, %c0_i32_0 : i32, i32
  }
  func.func @transform_5(%arg0: i32) -> (i32, i32) {
    %c0_i32 = arith.constant 0 : i32
    %c0_i32_0 = arith.constant 0 : i32
    %c0_i32_1 = arith.constant 0 : i32
    return %c0_i32, %c0_i32_0 : i32, i32
  }
  func.func @transform_6(%arg0: i32) -> (i32, i32) {
    %c0_i32 = arith.constant 0 : i32
    %c0_i32_0 = arith.constant 0 : i32
    %c0_i32_1 = arith.constant 0 : i32
    return %c0_i32, %c0_i32_0 : i32, i32
  }
  func.func @transform_7(%arg0: i32) -> (i32, i32) {
    %c0_i32 = arith.constant 0 : i32
    %c0_i32_0 = arith.constant 0 : i32
    %c0_i32_1 = arith.constant 0 : i32
    return %c0_i32, %c0_i32_0 : i32, i32
  }
  func.func @transform_8(%arg0: i32) -> (i32, i32) {
    %c0_i32 = arith.constant 0 : i32
    %c0_i32_0 = arith.constant 0 : i32
    %c0_i32_1 = arith.constant 0 : i32
    return %c0_i32, %c0_i32_0 : i32, i32
  }
  func.func @transform_9(%arg0: i32) -> (i32, i32) {
    %c0_i32 = arith.constant 0 : i32
    %c0_i32_0 = arith.constant 0 : i32
    %c0_i32_1 = arith.constant 0 : i32
    return %c0_i32, %c0_i32_0 : i32, i32
  }
  func.func @transform_10(%arg0: i32) -> (i32, i32) {
    %c0_i32 = arith.constant 0 : i32
    %c0_i32_0 = arith.constant 0 : i32
    %c0_i32_1 = arith.constant 0 : i32
    return %c0_i32, %c0_i32_0 : i32, i32
  }
  func.func @transform_11(%arg0: i32) -> (i32, i32, i32) {
    %c0_i32 = arith.constant 0 : i32
    %c0_i32_0 = arith.constant 0 : i32
    %c0_i32_1 = arith.constant 0 : i32
    return %c0_i32, %arg0, %c0_i32_0 : i32, i32, i32
  }
}

</mosaic_0001>

<llo_original>
// kernel: tpu_custom_call.1
$region0: #{tpu_custom_call.1}
  #allocation0 [shape = 'u32[]', space=smem, size = 0x4, offset = 0x4, fixed_abs, tag = 'smem constant byte address 0x4 - core index']
  #allocation1 [shape = 'u32[144,128]{1,0:T(1,128)}', space=vmem, size = 0x12000, scoped, tag = 'internal scratch']
  #allocation2 [shape = 'f32[8,8,128]{2,1,0:T(8,128)}', space=vmem, size = 0x8000, scoped, tag = 'scratch operand']
  %s0 = inlined_call_operand.hbm [shape: f32[8,8,128], index: 0, kind: input, shape index: {}]
  %s1 = inlined_call_operand.hbm [shape: f32[128,128], index: 1, kind: input, shape index: {}]
  %s2 = inlined_call_operand.hbm [shape: f32[128,128], index: 2, kind: input, shape index: {}]
  %s3 = inlined_call_operand.vmem [shape: f32[1,128], index: 3, kind: input, shape index: {}]
  %s4 = inlined_call_operand.hbm [shape: f32[128,128], index: 4, kind: input, shape index: {}]
  %s5 = inlined_call_operand.hbm [shape: f32[128,128], index: 5, kind: input, shape index: {}]
  %s6 = inlined_call_operand.vmem [shape: f32[1,128], index: 6, kind: input, shape index: {}]
  %s7 = inlined_call_operand.hbm [shape: f32[128,128], index: 7, kind: input, shape index: {}]
  %s8 = inlined_call_operand.vmem [shape: f32[1,128], index: 8, kind: input, shape index: {}]
  %s9 = inlined_call_operand.hbm [shape: f32[128,128], index: 9, kind: input, shape index: {}]
  %s10 = inlined_call_operand.vmem [shape: f32[1,128], index: 10, kind: input, shape index: {}]
  %s11 = inlined_call_operand.hbm [shape: f32[8,8,128], index: 11, kind: output, shape index: {}]
  %s12 = sld [smem:[#allocation0]]
  $region82: #{tpu_custom_call.1} parent=0
    _
  %s14 = ssub.s32 1, %s12
  %s15 = scalar_select 0, %s14, %s12
  $region1: #{tpu_custom_call.1} parent=0
    #allocation3 [shape = 'u8[32768]{0}', space=vmem, size = 0x8000, scoped, tag = 'input window, operand 0, single buffered']
    #allocation4 [shape = 's32[1]{0}', space=sflag, size = 0x4, scoped, tag = 'scoped memory for tpu_custom_call.1']
    #allocation5 [shape = 's32[1]{0}', space=sflag, size = 0x4, scoped, tag = 'scoped memory for tpu_custom_call.1']
    #allocation6 [shape = 'u8[65536]{0}', space=vmem, size = 0x10000, scoped, tag = 'input window, operand 1, single buffered']
    #allocation7 [shape = 's32[1]{0}', space=sflag, size = 0x4, scoped, tag = 'scoped memory for tpu_custom_call.1']
    #allocation8 [shape = 'u8[65536]{0}', space=vmem, size = 0x10000, scoped, tag = 'input window, operand 2, single buffered']
    #allocation9 [shape = 'u8[65536]{0}', space=vmem, size = 0x10000, scoped, tag = 'input window, operand 4, single buffered']
    #allocation10 [shape = 's32[1]{0}', space=sflag, size = 0x4, scoped, tag = 'scoped memory for tpu_custom_call.1']
    #allocation11 [shape = 'u8[65536]{0}', space=vmem, size = 0x10000, scoped, tag = 'input window, operand 5, single buffered']
    #allocation12 [shape = 'u8[65536]{0}', space=vmem, size = 0x10000, scoped, tag = 'input window, operand 7, single buffered']
    #allocation13 [shape = 's32[1]{0}', space=sflag, size = 0x4, scoped, tag = 'scoped memory for tpu_custom_call.1']
    #allocation14 [shape = 'u8[65536]{0}', space=vmem, size = 0x10000, scoped, tag = 'input window, operand 9, single buffered']
    #allocation15 [shape = 'u8[32768]{0}', space=vmem, size = 0x8000, scoped, tag = 'output window, operand 0, single buffered']
    %16 = vsyncpa [#allocation4], 0
    %17 = vsyncpa [#allocation7], 0
    %18 = vsyncpa [#allocation10], 0
    %19 = vsyncpa [#allocation13], 0
    %20 = vsyncpa [#allocation5], 0
    // Predicated region
    $region2: #{tpu_custom_call.1} parent=1 // pred_check
      _
    $region3: #{tpu_custom_call.1} parent=1 // pred_check_branch
      %22 = sbr.rel (0) target = $region5
    $region4: #{tpu_custom_call.1} parent=1 // pred_region
      %s24 = ssub.s32 1024, 1024
      %25 = vsyncadd [#allocation4], %s24
      %s26 = sshll.u32 [#allocation3], 4
      %s27 = int_to_ptr.vmem [resolvable:$true] %s26
      %32 = dma.hbm_to_vmem [thread:$0]  %s0, 1024, %s27, [#allocation4], 128, 128, 8
    $region5: #{tpu_custom_call.1} parent=1 // pred_fallthru
      _
    // Predicated region
    $region6: #{tpu_custom_call.1} parent=1 // pred_check
      _
    $region7: #{tpu_custom_call.1} parent=1 // pred_check_branch
      %34 = sbr.rel (0) target = $region9
    $region8: #{tpu_custom_call.1} parent=1 // pred_region
      %s36 = ssub.s32 2048, 2048
      %37 = vsyncadd [#allocation7], %s36
      %s38 = sshll.u32 [#allocation6], 4
      %s39 = int_to_ptr.vmem [resolvable:$true] %s38
      %44 = dma.hbm_to_vmem [thread:$0]  %s1, 2048, %s39, [#allocation7], 128, 128, 8
    $region9: #{tpu_custom_call.1} parent=1 // pred_fallthru
      _
    // Predicated region
    $region10: #{tpu_custom_call.1} parent=1 // pred_check
      _
    $region11: #{tpu_custom_call.1} parent=1 // pred_check_branch
      %46 = sbr.rel (0) target = $region13
    $region12: #{tpu_custom_call.1} parent=1 // pred_region
      %s48 = ssub.s32 2048, 2048
      %49 = vsyncadd [#allocation7], %s48
      %s50 = sshll.u32 [#allocation8], 4
      %s51 = int_to_ptr.vmem [resolvable:$true] %s50
      %56 = dma.hbm_to_vmem [thread:$0]  %s2, 2048, %s51, [#allocation7], 128, 128, 8
    $region13: #{tpu_custom_call.1} parent=1 // pred_fallthru
      _
    // Predicated region
    $region14: #{tpu_custom_call.1} parent=1 // pred_check
      _
    $region15: #{tpu_custom_call.1} parent=1 // pred_check_branch
      %58 = sbr.rel (0) target = $region17
    $region16: #{tpu_custom_call.1} parent=1 // pred_region
      _
    $region17: #{tpu_custom_call.1} parent=1 // pred_fallthru
      _
    // Predicated region
    $region18: #{tpu_custom_call.1} parent=1 // pred_check
      _
    $region19: #{tpu_custom_call.1} parent=1 // pred_check_branch
      %60 = sbr.rel (0) target = $region21
    $region20: #{tpu_custom_call.1} parent=1 // pred_region
      %s62 = ssub.s32 2048, 2048
      %63 = vsyncadd [#allocation10], %s62
      %s64 = sshll.u32 [#allocation9], 4
      %s65 = int_to_ptr.vmem [resolvable:$true] %s64
      %70 = dma.hbm_to_vmem [thread:$0]  %s4, 2048, %s65, [#allocation10], 128, 128, 8
    $region21: #{tpu_custom_call.1} parent=1 // pred_fallthru
      _
    // Predicated region
    $region22: #{tpu_custom_call.1} parent=1 // pred_check
      _
    $region23: #{tpu_custom_call.1} parent=1 // pred_check_branch
      %72 = sbr.rel (0) target = $region25
    $region24: #{tpu_custom_call.1} parent=1 // pred_region
      %s74 = ssub.s32 2048, 2048
      %75 = vsyncadd [#allocation10], %s74
      %s76 = sshll.u32 [#allocation11], 4
      %s77 = int_to_ptr.vmem [resolvable:$true] %s76
      %82 = dma.hbm_to_vmem [thread:$0]  %s5, 2048, %s77, [#allocation10], 128, 128, 8
    $region25: #{tpu_custom_call.1} parent=1 // pred_fallthru
      _
    // Predicated region
    $region26: #{tpu_custom_call.1} parent=1 // pred_check
      _
    $region27: #{tpu_custom_call.1} parent=1 // pred_check_branch
      %84 = sbr.rel (0) target = $region29
    $region28: #{tpu_custom_call.1} parent=1 // pred_region
      _
    $region29: #{tpu_custom_call.1} parent=1 // pred_fallthru
      _
    // Predicated region
    $region30: #{tpu_custom_call.1} parent=1 // pred_check
      _
    $region31: #{tpu_custom_call.1} parent=1 // pred_check_branch
      %86 = sbr.rel (0) target = $region33
    $region32: #{tpu_custom_call.1} parent=1 // pred_region
      %s88 = ssub.s32 2048, 2048
      %89 = vsyncadd [#allocation13], %s88
      %s90 = sshll.u32 [#allocation12], 4
      %s91 = int_to_ptr.vmem [resolvable:$true] %s90
      %96 = dma.hbm_to_vmem [thread:$0]  %s7, 2048, %s91, [#allocation13], 128, 128, 8
    $region33: #{tpu_custom_call.1} parent=1 // pred_fallthru
      _
    // Predicated region
    $region34: #{tpu_custom_call.1} parent=1 // pred_check
      _
    $region35: #{tpu_custom_call.1} parent=1 // pred_check_branch
      %98 = sbr.rel (0) target = $region37
    $region36: #{tpu_custom_call.1} parent=1 // pred_region
      _
    $region37: #{tpu_custom_call.1} parent=1 // pred_fallthru
      _
    // Predicated region
    $region38: #{tpu_custom_call.1} parent=1 // pred_check
      _
    $region39: #{tpu_custom_call.1} parent=1 // pred_check_branch
      %100 = sbr.rel (0) target = $region41
    $region40: #{tpu_custom_call.1} parent=1 // pred_region
      %s102 = ssub.s32 2048, 2048
      %103 = vsyncadd [#allocation13], %s102
      %s104 = sshll.u32 [#allocation14], 4
      %s105 = int_to_ptr.vmem [resolvable:$true] %s104
      %110 = dma.hbm_to_vmem [thread:$0]  %s9, 2048, %s105, [#allocation13], 128, 128, 8
    $region41: #{tpu_custom_call.1} parent=1 // pred_fallthru
      _
    // Predicated region
    $region42: #{tpu_custom_call.1} parent=1 // pred_check
      _
    $region43: #{tpu_custom_call.1} parent=1 // pred_check_branch
      %112 = sbr.rel (0) target = $region45
    $region44: #{tpu_custom_call.1} parent=1 // pred_region
      _
    $region45: #{tpu_custom_call.1} parent=1 // pred_fallthru
      _
    // Predicated region
    $region46: #{tpu_custom_call.1} parent=1 // pred_check
      _
    $region47: #{tpu_custom_call.1} parent=1 // pred_check_branch
      %114 = sbr.rel (0) target = $region49
    $region48: #{tpu_custom_call.1} parent=1 // pred_region
      %115 = dma.done [#allocation4], 1024
    $region49: #{tpu_custom_call.1} parent=1 // pred_fallthru
      _
    // Predicated region
    $region50: #{tpu_custom_call.1} parent=1 // pred_check
      _
    $region51: #{tpu_custom_call.1} parent=1 // pred_check_branch
      %117 = sbr.rel (0) target = $region53
    $region52: #{tpu_custom_call.1} parent=1 // pred_region
      %118 = dma.done [#allocation7], 2048
    $region53: #{tpu_custom_call.1} parent=1 // pred_fallthru
      _
    // Predicated region
    $region54: #{tpu_custom_call.1} parent=1 // pred_check
      _
    $region55: #{tpu_custom_call.1} parent=1 // pred_check_branch
      %120 = sbr.rel (0) target = $region57
    $region56: #{tpu_custom_call.1} parent=1 // pred_region
      %121 = dma.done [#allocation7], 2048
    $region57: #{tpu_custom_call.1} parent=1 // pred_fallthru
      _
    // Predicated region
    $region58: #{tpu_custom_call.1} parent=1 // pred_check
      _
    $region59: #{tpu_custom_call.1} parent=1 // pred_check_branch
      %123 = sbr.rel (0) target = $region61
    $region60: #{tpu_custom_call.1} parent=1 // pred_region
      %124 = dma.done [#allocation10], 2048
    $region61: #{tpu_custom_call.1} parent=1 // pred_fallthru
      _
    // Predicated region
    $region62: #{tpu_custom_call.1} parent=1 // pred_check
      _
    $region63: #{tpu_custom_call.1} parent=1 // pred_check_branch
      %126 = sbr.rel (0) target = $region65
    $region64: #{tpu_custom_call.1} parent=1 // pred_region
      %127 = dma.done [#allocation10], 2048
    $region65: #{tpu_custom_call.1} parent=1 // pred_fallthru
      _
    // Predicated region
    $region66: #{tpu_custom_call.1} parent=1 // pred_check
      _
    $region67: #{tpu_custom_call.1} parent=1 // pred_check_branch
      %129 = sbr.rel (0) target = $region69
    $region68: #{tpu_custom_call.1} parent=1 // pred_region
      %130 = dma.done [#allocation13], 2048
    $region69: #{tpu_custom_call.1} parent=1 // pred_fallthru
      _
    // Predicated region
    $region70: #{tpu_custom_call.1} parent=1 // pred_check
      _
    $region71: #{tpu_custom_call.1} parent=1 // pred_check_branch
      %132 = sbr.rel (0) target = $region73
    $region72: #{tpu_custom_call.1} parent=1 // pred_region
      %133 = dma.done [#allocation13], 2048
    $region73: #{tpu_custom_call.1} parent=1 // pred_fallthru
      _
    %v134 = vld [vmem:[#allocation3] sm:$0xff]
    %v135 = vld [vmem:[#allocation3 + $0x8] sm:$0xff]
    %v136 = vld [vmem:[#allocation3 + $0x10] sm:$0xff]
    %v137 = vld [vmem:[#allocation3 + $0x18] sm:$0xff]
    %v138 = vld [vmem:[#allocation3 + $0x20] sm:$0xff]
    %v139 = vld [vmem:[#allocation3 + $0x28] sm:$0xff]
    %v140 = vld [vmem:[#allocation3 + $0x30] sm:$0xff]
    %v141 = vld [vmem:[#allocation3 + $0x38] sm:$0xff]
    %v142 = vld [vmem:[#allocation6] sm:$0xff]
    %v143 = vld [vmem:[#allocation6 + $0x8] sm:$0xff]
    %v144 = vld [vmem:[#allocation6 + $0x10] sm:$0xff]
    %v145 = vld [vmem:[#allocation6 + $0x18] sm:$0xff]
    %v146 = vld [vmem:[#allocation6 + $0x20] sm:$0xff]
    %v147 = vld [vmem:[#allocation6 + $0x28] sm:$0xff]
    %v148 = vld [vmem:[#allocation6 + $0x30] sm:$0xff]
    %v149 = vld [vmem:[#allocation6 + $0x38] sm:$0xff]
    %v150 = vld [vmem:[#allocation6 + $0x40] sm:$0xff]
    %v151 = vld [vmem:[#allocation6 + $0x48] sm:$0xff]
    %v152 = vld [vmem:[#allocation6 + $0x50] sm:$0xff]
    %v153 = vld [vmem:[#allocation6 + $0x58] sm:$0xff]
    %v154 = vld [vmem:[#allocation6 + $0x60] sm:$0xff]
    %v155 = vld [vmem:[#allocation6 + $0x68] sm:$0xff]
    %v156 = vld [vmem:[#allocation6 + $0x70] sm:$0xff]
    %v157 = vld [vmem:[#allocation6 + $0x78] sm:$0xff]
    %v158 = vld [vmem:[%s3] sm:$0x1]
    %v160 = vlaneseq
    %v161 = vshrl.u32 %v160, 7
    %v162 = vsub.s32 0, %v161
    %v163 = vrot.slane %v158, %v162
    %165 = vmatprep.subr.mxu0 0.0
    %166 = vmatpush1.msra.mxu0 %v142
    %167 = vmatprep.subr.mxu0 0.0
    %168 = vmatpush1.msra.mxu0 %v143
    %169 = vmatprep.subr.mxu0 0.0
    %170 = vmatpush1.msra.mxu0 %v144
    %171 = vmatprep.subr.mxu0 0.0
    %172 = vmatpush1.msra.mxu0 %v145
    %173 = vmatprep.subr.mxu0 0.0
    %174 = vmatpush1.msra.mxu0 %v146
    %175 = vmatprep.subr.mxu0 0.0
    %176 = vmatpush1.msra.mxu0 %v147
    %177 = vmatprep.subr.mxu0 0.0
    %178 = vmatpush1.msra.mxu0 %v148
    %179 = vmatprep.subr.mxu0 0.0
    %180 = vmatpush1.msra.mxu0 %v149
    %181 = vmatprep.subr.mxu0 0.0
    %182 = vmatpush1.msra.mxu0 %v150
    %183 = vmatprep.subr.mxu0 0.0
    %184 = vmatpush1.msra.mxu0 %v151
    %185 = vmatprep.subr.mxu0 0.0
    %186 = vmatpush1.msra.mxu0 %v152
    %187 = vmatprep.subr.mxu0 0.0
    %188 = vmatpush1.msra.mxu0 %v153
    %189 = vmatprep.subr.mxu0 0.0
    %190 = vmatpush1.msra.mxu0 %v154
    %191 = vmatprep.subr.mxu0 0.0
    %192 = vmatpush1.msra.mxu0 %v155
    %193 = vmatprep.subr.mxu0 0.0
    %194 = vmatpush1.msra.mxu0 %v156
    %195 = vmatprep.subr.mxu0 0.0
    %196 = vmatpush1.msra.mxu0 %v157
    %197 = vmatprep.subr.mxu0 0.0
    %198 = vmatpush1.msra.mxu0 0.0
    %199 = vmatprep.subr.mxu0 0.0
    %200 = vmatpush1.msra.mxu0 0.0
    %201 = vmatprep.subr.mxu0 0.0
    %202 = vmatpush1.msra.mxu0 0.0
    %203 = vmatprep.subr.mxu0 0.0
    %204 = vmatpush1.msra.mxu0 0.0
    %205 = vmatprep.subr.mxu0 0.0
    %206 = vmatpush1.msra.mxu0 0.0
    %207 = vmatprep.subr.mxu0 0.0
    %208 = vmatpush1.msra.mxu0 0.0
    %209 = vmatprep.subr.mxu0 0.0
    %210 = vmatpush1.msra.mxu0 0.0
    %211 = vmatprep.subr.mxu0 0.0
    %212 = vmatpush1.msra.mxu0 0.0
    %213 = vmatprep.subr.mxu0 0.0
    %214 = vmatpush1.msra.mxu0 0.0
    %215 = vmatprep.subr.mxu0 0.0
    %216 = vmatpush1.msra.mxu0 0.0
    %217 = vmatprep.subr.mxu0 0.0
    %218 = vmatpush1.msra.mxu0 0.0
    %219 = vmatprep.subr.mxu0 0.0
    %220 = vmatpush1.msra.mxu0 0.0
    %221 = vmatprep.subr.mxu0 0.0
    %222 = vmatpush1.msra.mxu0 0.0
    %223 = vmatprep.subr.mxu0 0.0
    %224 = vmatpush1.msra.mxu0 0.0
    %225 = vmatprep.subr.mxu0 0.0
    %226 = vmatpush1.msra.mxu0 0.0
    %227 = vmatprep.subr.mxu0 0.0
    %228 = vmatpush1.msra.mxu0 0.0
    %229 = vmatprep.mubr.f32.mxu0 0.0
    %230 = vmatmul.mubr.f32.gmra.mrb[0].mxu0 %v134
    %v231 = vpop.f32.mrb[0].mxu0
    %v232 = vadd.f32 %v163, %v231
    %v233 = vpop.f32.mrb[0].mxu0
    %234 = vmatprep.mubr.f32.mxu0 0.0
    %235 = vmatmul.mubr.f32.gmra.mrb[0].mxu0 %v135
    %v236 = vpop.f32.mrb[0].mxu0
    %v237 = vadd.f32 %v163, %v236
    %v238 = vpop.f32.mrb[0].mxu0
    %239 = vmatprep.mubr.f32.mxu0 0.0
    %240 = vmatmul.mubr.f32.gmra.mrb[0].mxu0 %v136
    %v241 = vpop.f32.mrb[0].mxu0
    %v242 = vadd.f32 %v163, %v241
    %v243 = vpop.f32.mrb[0].mxu0
    %244 = vmatprep.mubr.f32.mxu0 0.0
    %245 = vmatmul.mubr.f32.gmra.mrb[0].mxu0 %v137
    %v246 = vpop.f32.mrb[0].mxu0
    %v247 = vadd.f32 %v163, %v246
    %v248 = vpop.f32.mrb[0].mxu0
    %249 = vmatprep.mubr.f32.mxu0 0.0
    %250 = vmatmul.mubr.f32.gmra.mrb[0].mxu0 %v138
    %v251 = vpop.f32.mrb[0].mxu0
    %v252 = vadd.f32 %v163, %v251
    %v253 = vpop.f32.mrb[0].mxu0
    %254 = vmatprep.mubr.f32.mxu0 0.0
    %255 = vmatmul.mubr.f32.gmra.mrb[0].mxu0 %v139
    %v256 = vpop.f32.mrb[0].mxu0
    %v257 = vadd.f32 %v163, %v256
    %v258 = vpop.f32.mrb[0].mxu0
    %259 = vmatprep.mubr.f32.mxu0 0.0
    %260 = vmatmul.mubr.f32.gmra.mrb[0].mxu0 %v140
    %v261 = vpop.f32.mrb[0].mxu0
    %v262 = vadd.f32 %v163, %v261
    %v263 = vpop.f32.mrb[0].mxu0
    %264 = vmatprep.mubr.f32.mxu0 0.0
    %265 = vmatmul.mubr.f32.gmra.mrb[0].mxu0 %v141
    %v266 = vpop.f32.mrb[0].mxu0
    %v267 = vadd.f32 %v163, %v266
    %v268 = vpop.f32.mrb[0].mxu0
    %269 = vdwg.mxu0
    %270 = vst [vmem:[#allocation2] sm:$0xff] %v232
    %271 = vst [vmem:[#allocation2 + $0x8] sm:$0xff] %v237
    %272 = vst [vmem:[#allocation2 + $0x10] sm:$0xff] %v242
    %273 = vst [vmem:[#allocation2 + $0x18] sm:$0xff] %v247
    %274 = vst [vmem:[#allocation2 + $0x20] sm:$0xff] %v252
    %275 = vst [vmem:[#allocation2 + $0x28] sm:$0xff] %v257
    %276 = vst [vmem:[#allocation2 + $0x30] sm:$0xff] %v262
    %277 = vst [vmem:[#allocation2 + $0x38] sm:$0xff] %v267
    %v278 = vld [vmem:[#allocation8] sm:$0xff]
    %v279 = vld [vmem:[#allocation8 + $0x8] sm:$0xff]
    %v280 = vld [vmem:[#allocation8 + $0x10] sm:$0xff]
    %v281 = vld [vmem:[#allocation8 + $0x18] sm:$0xff]
    %v282 = vld [vmem:[#allocation8 + $0x20] sm:$0xff]
    %v283 = vld [vmem:[#allocation8 + $0x28] sm:$0xff]
    %v284 = vld [vmem:[#allocation8 + $0x30] sm:$0xff]
    %v285 = vld [vmem:[#allocation8 + $0x38] sm:$0xff]
    %v286 = vld [vmem:[#allocation8 + $0x40] sm:$0xff]
    %v287 = vld [vmem:[#allocation8 + $0x48] sm:$0xff]
    %v288 = vld [vmem:[#allocation8 + $0x50] sm:$0xff]
    %v289 = vld [vmem:[#allocation8 + $0x58] sm:$0xff]
    %v290 = vld [vmem:[#allocation8 + $0x60] sm:$0xff]
    %v291 = vld [vmem:[#allocation8 + $0x68] sm:$0xff]
    %v292 = vld [vmem:[#allocation8 + $0x70] sm:$0xff]
    %v293 = vld [vmem:[#allocation8 + $0x78] sm:$0xff]
    %v294 = vld [vmem:[#allocation2] sm:$0xff]
    %295 = vmatprep.subr.mxu0 0.0
    %296 = vmatpush1.msra.mxu0 %v278
    %297 = vmatprep.subr.mxu0 0.0
    %298 = vmatpush1.msra.mxu0 %v279
    %299 = vmatprep.subr.mxu0 0.0
    %300 = vmatpush1.msra.mxu0 %v280
    %301 = vmatprep.subr.mxu0 0.0
    %302 = vmatpush1.msra.mxu0 %v281
    %303 = vmatprep.subr.mxu0 0.0
    %304 = vmatpush1.msra.mxu0 %v282
    %305 = vmatprep.subr.mxu0 0.0
    %306 = vmatpush1.msra.mxu0 %v283
    %307 = vmatprep.subr.mxu0 0.0
    %308 = vmatpush1.msra.mxu0 %v284
    %309 = vmatprep.subr.mxu0 0.0
    %310 = vmatpush1.msra.mxu0 %v285
    %311 = vmatprep.subr.mxu0 0.0
    %312 = vmatpush1.msra.mxu0 %v286
    %313 = vmatprep.subr.mxu0 0.0
    %314 = vmatpush1.msra.mxu0 %v287
    %315 = vmatprep.subr.mxu0 0.0
    %316 = vmatpush1.msra.mxu0 %v288
    %317 = vmatprep.subr.mxu0 0.0
    %318 = vmatpush1.msra.mxu0 %v289
    %319 = vmatprep.subr.mxu0 0.0
    %320 = vmatpush1.msra.mxu0 %v290
    %321 = vmatprep.subr.mxu0 0.0
    %322 = vmatpush1.msra.mxu0 %v291
    %323 = vmatprep.subr.mxu0 0.0
    %324 = vmatpush1.msra.mxu0 %v292
    %325 = vmatprep.subr.mxu0 0.0
    %326 = vmatpush1.msra.mxu0 %v293
    %327 = vmatprep.subr.mxu0 0.0
    %328 = vmatpush1.msra.mxu0 0.0
    %329 = vmatprep.subr.mxu0 0.0
    %330 = vmatpush1.msra.mxu0 0.0
    %331 = vmatprep.subr.mxu0 0.0
    %332 = vmatpush1.msra.mxu0 0.0
    %333 = vmatprep.subr.mxu0 0.0
    %334 = vmatpush1.msra.mxu0 0.0
    %335 = vmatprep.subr.mxu0 0.0
    %336 = vmatpush1.msra.mxu0 0.0
    %337 = vmatprep.subr.mxu0 0.0
    %338 = vmatpush1.msra.mxu0 0.0
    %339 = vmatprep.subr.mxu0 0.0
    %340 = vmatpush1.msra.mxu0 0.0
    %341 = vmatprep.subr.mxu0 0.0
    %342 = vmatpush1.msra.mxu0 0.0
    %343 = vmatprep.subr.mxu0 0.0
    %344 = vmatpush1.msra.mxu0 0.0
    %345 = vmatprep.subr.mxu0 0.0
    %346 = vmatpush1.msra.mxu0 0.0
    %347 = vmatprep.subr.mxu0 0.0
    %348 = vmatpush1.msra.mxu0 0.0
    %349 = vmatprep.subr.mxu0 0.0
    %350 = vmatpush1.msra.mxu0 0.0
    %351 = vmatprep.subr.mxu0 0.0
    %352 = vmatpush1.msra.mxu0 0.0
    %353 = vmatprep.subr.mxu0 0.0
    %354 = vmatpush1.msra.mxu0 0.0
    %355 = vmatprep.subr.mxu0 0.0
    %356 = vmatpush1.msra.mxu0 0.0
    %357 = vmatprep.subr.mxu0 0.0
    %358 = vmatpush1.msra.mxu0 0.0
    %359 = vmatprep.mubr.f32.mxu0 0.0
    %360 = vmatmul.mubr.f32.gmra.mrb[0].mxu0 0.0
    %v361 = vpop.f32.mrb[0].mxu0
    %v362 = vadd.f32 0.0, %v361
    %v363 = vpop.f32.mrb[0].mxu0
    %364 = vdwg.mxu0
    %v365 = vadd.f32 %v294, %v362
    %v366 = vtanh.pop %v365
    %367 = vst [vmem:[#allocation2] sm:$0xff] %v366
    %s368 = scalar_lea.vmem [#allocation2], 8
    %v369 = vld [vmem:[%s368] sm:$0xff]
    %370 = vmatprep.subr.mxu0 0.0
    %371 = vmatpush1.msra.mxu0 %v278
    %372 = vmatprep.subr.mxu0 0.0
    %373 = vmatpush1.msra.mxu0 %v279
    %374 = vmatprep.subr.mxu0 0.0
    %375 = vmatpush1.msra.mxu0 %v280
    %376 = vmatprep.subr.mxu0 0.0
    %377 = vmatpush1.msra.mxu0 %v281
    %378 = vmatprep.subr.mxu0 0.0
    %379 = vmatpush1.msra.mxu0 %v282
    %380 = vmatprep.subr.mxu0 0.0
    %381 = vmatpush1.msra.mxu0 %v283
    %382 = vmatprep.subr.mxu0 0.0
    %383 = vmatpush1.msra.mxu0 %v284
    %384 = vmatprep.subr.mxu0 0.0
    %385 = vmatpush1.msra.mxu0 %v285
    %386 = vmatprep.subr.mxu0 0.0
    %387 = vmatpush1.msra.mxu0 %v286
    %388 = vmatprep.subr.mxu0 0.0
    %389 = vmatpush1.msra.mxu0 %v287
    %390 = vmatprep.subr.mxu0 0.0
    %391 = vmatpush1.msra.mxu0 %v288
    %392 = vmatprep.subr.mxu0 0.0
    %393 = vmatpush1.msra.mxu0 %v289
    %394 = vmatprep.subr.mxu0 0.0
    %395 = vmatpush1.msra.mxu0 %v290
    %396 = vmatprep.subr.mxu0 0.0
    %397 = vmatpush1.msra.mxu0 %v291
    %398 = vmatprep.subr.mxu0 0.0
    %399 = vmatpush1.msra.mxu0 %v292
    %400 = vmatprep.subr.mxu0 0.0
    %401 = vmatpush1.msra.mxu0 %v293
    %402 = vmatprep.subr.mxu0 0.0
    %403 = vmatpush1.msra.mxu0 0.0
    %404 = vmatprep.subr.mxu0 0.0
    %405 = vmatpush1.msra.mxu0 0.0
    %406 = vmatprep.subr.mxu0 0.0
    %407 = vmatpush1.msra.mxu0 0.0
    %408 = vmatprep.subr.mxu0 0.0
    %409 = vmatpush1.msra.mxu0 0.0
    %410 = vmatprep.subr.mxu0 0.0
    %411 = vmatpush1.msra.mxu0 0.0
    %412 = vmatprep.subr.mxu0 0.0
    %413 = vmatpush1.msra.mxu0 0.0
    %414 = vmatprep.subr.mxu0 0.0
    %415 = vmatpush1.msra.mxu0 0.0
    %416 = vmatprep.subr.mxu0 0.0
    %417 = vmatpush1.msra.mxu0 0.0
    %418 = vmatprep.subr.mxu0 0.0
    %419 = vmatpush1.msra.mxu0 0.0
    %420 = vmatprep.subr.mxu0 0.0
    %421 = vmatpush1.msra.mxu0 0.0
    %422 = vmatprep.subr.mxu0 0.0
    %423 = vmatpush1.msra.mxu0 0.0
    %424 = vmatprep.subr.mxu0 0.0
    %425 = vmatpush1.msra.mxu0 0.0
    %426 = vmatprep.subr.mxu0 0.0
    %427 = vmatpush1.msra.mxu0 0.0
    %428 = vmatprep.subr.mxu0 0.0
    %429 = vmatpush1.msra.mxu0 0.0
    %430 = vmatprep.subr.mxu0 0.0
    %431 = vmatpush1.msra.mxu0 0.0
    %432 = vmatprep.subr.mxu0 0.0
    %433 = vmatpush1.msra.mxu0 0.0
    %434 = vmatprep.mubr.f32.mxu0 0.0
    %435 = vmatmul.mubr.f32.gmra.mrb[0].mxu0 %v366
    %v436 = vpop.f32.mrb[0].mxu0
    %v437 = vadd.f32 0.0, %v436
    %v438 = vpop.f32.mrb[0].mxu0
    %439 = vdwg.mxu0
    %v440 = vadd.f32 %v369, %v437
    %v441 = vtanh.pop %v440
    %442 = vst [vmem:[%s368] sm:$0xff] %v441
    %s443 = scalar_lea.vmem [#allocation2], 16
    %v444 = vld [vmem:[%s443] sm:$0xff]
    %445 = vmatprep.subr.mxu0 0.0
    %446 = vmatpush1.msra.mxu0 %v278
    %447 = vmatprep.subr.mxu0 0.0
    %448 = vmatpush1.msra.mxu0 %v279
    %449 = vmatprep.subr.mxu0 0.0
    %450 = vmatpush1.msra.mxu0 %v280
    %451 = vmatprep.subr.mxu0 0.0
    %452 = vmatpush1.msra.mxu0 %v281
    %453 = vmatprep.subr.mxu0 0.0
    %454 = vmatpush1.msra.mxu0 %v282
    %455 = vmatprep.subr.mxu0 0.0
    %456 = vmatpush1.msra.mxu0 %v283
    %457 = vmatprep.subr.mxu0 0.0
    %458 = vmatpush1.msra.mxu0 %v284
    %459 = vmatprep.subr.mxu0 0.0
    %460 = vmatpush1.msra.mxu0 %v285
    %461 = vmatprep.subr.mxu0 0.0
    %462 = vmatpush1.msra.mxu0 %v286
    %463 = vmatprep.subr.mxu0 0.0
    %464 = vmatpush1.msra.mxu0 %v287
    %465 = vmatprep.subr.mxu0 0.0
    %466 = vmatpush1.msra.mxu0 %v288
    %467 = vmatprep.subr.mxu0 0.0
    %468 = vmatpush1.msra.mxu0 %v289
    %469 = vmatprep.subr.mxu0 0.0
    %470 = vmatpush1.msra.mxu0 %v290
    %471 = vmatprep.subr.mxu0 0.0
    %472 = vmatpush1.msra.mxu0 %v291
    %473 = vmatprep.subr.mxu0 0.0
    %474 = vmatpush1.msra.mxu0 %v292
    %475 = vmatprep.subr.mxu0 0.0
    %476 = vmatpush1.msra.mxu0 %v293
    %477 = vmatprep.subr.mxu0 0.0
    %478 = vmatpush1.msra.mxu0 0.0
    %479 = vmatprep.subr.mxu0 0.0
    %480 = vmatpush1.msra.mxu0 0.0
    %481 = vmatprep.subr.mxu0 0.0
    %482 = vmatpush1.msra.mxu0 0.0
    %483 = vmatprep.subr.mxu0 0.0
    %484 = vmatpush1.msra.mxu0 0.0
    %485 = vmatprep.subr.mxu0 0.0
    %486 = vmatpush1.msra.mxu0 0.0
    %487 = vmatprep.subr.mxu0 0.0
    %488 = vmatpush1.msra.mxu0 0.0
    %489 = vmatprep.subr.mxu0 0.0
    %490 = vmatpush1.msra.mxu0 0.0
    %491 = vmatprep.subr.mxu0 0.0
    %492 = vmatpush1.msra.mxu0 0.0
    %493 = vmatprep.subr.mxu0 0.0
    %494 = vmatpush1.msra.mxu0 0.0
    %495 = vmatprep.subr.mxu0 0.0
    %496 = vmatpush1.msra.mxu0 0.0
    %497 = vmatprep.subr.mxu0 0.0
    %498 = vmatpush1.msra.mxu0 0.0
    %499 = vmatprep.subr.mxu0 0.0
    %500 = vmatpush1.msra.mxu0 0.0
    %501 = vmatprep.subr.mxu0 0.0
    %502 = vmatpush1.msra.mxu0 0.0
    %503 = vmatprep.subr.mxu0 0.0
    %504 = vmatpush1.msra.mxu0 0.0
    %505 = vmatprep.subr.mxu0 0.0
    %506 = vmatpush1.msra.mxu0 0.0
    %507 = vmatprep.subr.mxu0 0.0
    %508 = vmatpush1.msra.mxu0 0.0
    %509 = vmatprep.mubr.f32.mxu0 0.0
    %510 = vmatmul.mubr.f32.gmra.mrb[0].mxu0 %v441
    %v511 = vpop.f32.mrb[0].mxu0
    %v512 = vadd.f32 0.0, %v511
    %v513 = vpop.f32.mrb[0].mxu0
    %514 = vdwg.mxu0
    %v515 = vadd.f32 %v444, %v512
    %v516 = vtanh.pop %v515
    %517 = vst [vmem:[%s443] sm:$0xff] %v516
    %s518 = scalar_lea.vmem [#allocation2], 24
    %v519 = vld [vmem:[%s518] sm:$0xff]
    %520 = vmatprep.subr.mxu0 0.0
    %521 = vmatpush1.msra.mxu0 %v278
    %522 = vmatprep.subr.mxu0 0.0
    %523 = vmatpush1.msra.mxu0 %v279
    %524 = vmatprep.subr.mxu0 0.0
    %525 = vmatpush1.msra.mxu0 %v280
    %526 = vmatprep.subr.mxu0 0.0
    %527 = vmatpush1.msra.mxu0 %v281
    %528 = vmatprep.subr.mxu0 0.0
    %529 = vmatpush1.msra.mxu0 %v282
    %530 = vmatprep.subr.mxu0 0.0
    %531 = vmatpush1.msra.mxu0 %v283
    %532 = vmatprep.subr.mxu0 0.0
    %533 = vmatpush1.msra.mxu0 %v284
    %534 = vmatprep.subr.mxu0 0.0
    %535 = vmatpush1.msra.mxu0 %v285
    %536 = vmatprep.subr.mxu0 0.0
    %537 = vmatpush1.msra.mxu0 %v286
    %538 = vmatprep.subr.mxu0 0.0
    %539 = vmatpush1.msra.mxu0 %v287
    %540 = vmatprep.subr.mxu0 0.0
    %541 = vmatpush1.msra.mxu0 %v288
    %542 = vmatprep.subr.mxu0 0.0
    %543 = vmatpush1.msra.mxu0 %v289
    %544 = vmatprep.subr.mxu0 0.0
    %545 = vmatpush1.msra.mxu0 %v290
    %546 = vmatprep.subr.mxu0 0.0
    %547 = vmatpush1.msra.mxu0 %v291
    %548 = vmatprep.subr.mxu0 0.0
    %549 = vmatpush1.msra.mxu0 %v292
    %550 = vmatprep.subr.mxu0 0.0
    %551 = vmatpush1.msra.mxu0 %v293
    %552 = vmatprep.subr.mxu0 0.0
    %553 = vmatpush1.msra.mxu0 0.0
    %554 = vmatprep.subr.mxu0 0.0
    %555 = vmatpush1.msra.mxu0 0.0
    %556 = vmatprep.subr.mxu0 0.0
    %557 = vmatpush1.msra.mxu0 0.0
    %558 = vmatprep.subr.mxu0 0.0
    %559 = vmatpush1.msra.mxu0 0.0
    %560 = vmatprep.subr.mxu0 0.0
    %561 = vmatpush1.msra.mxu0 0.0
    %562 = vmatprep.subr.mxu0 0.0
    %563 = vmatpush1.msra.mxu0 0.0
    %564 = vmatprep.subr.mxu0 0.0
    %565 = vmatpush1.msra.mxu0 0.0
    %566 = vmatprep.subr.mxu0 0.0
    %567 = vmatpush1.msra.mxu0 0.0
    %568 = vmatprep.subr.mxu0 0.0
    %569 = vmatpush1.msra.mxu0 0.0
    %570 = vmatprep.subr.mxu0 0.0
    %571 = vmatpush1.msra.mxu0 0.0
    %572 = vmatprep.subr.mxu0 0.0
    %573 = vmatpush1.msra.mxu0 0.0
    %574 = vmatprep.subr.mxu0 0.0
    %575 = vmatpush1.msra.mxu0 0.0
    %576 = vmatprep.subr.mxu0 0.0
    %577 = vmatpush1.msra.mxu0 0.0
    %578 = vmatprep.subr.mxu0 0.0
    %579 = vmatpush1.msra.mxu0 0.0
    %580 = vmatprep.subr.mxu0 0.0
    %581 = vmatpush1.msra.mxu0 0.0
    %582 = vmatprep.subr.mxu0 0.0
    %583 = vmatpush1.msra.mxu0 0.0
    %584 = vmatprep.mubr.f32.mxu0 0.0
    %585 = vmatmul.mubr.f32.gmra.mrb[0].mxu0 %v516
    %v586 = vpop.f32.mrb[0].mxu0
    %v587 = vadd.f32 0.0, %v586
    %v588 = vpop.f32.mrb[0].mxu0
    %589 = vdwg.mxu0
    %v590 = vadd.f32 %v519, %v587
    %v591 = vtanh.pop %v590
    %592 = vst [vmem:[%s518] sm:$0xff] %v591
    %s593 = scalar_lea.vmem [#allocation2], 32
    %v594 = vld [vmem:[%s593] sm:$0xff]
    %595 = vmatprep.subr.mxu0 0.0
    %596 = vmatpush1.msra.mxu0 %v278
    %597 = vmatprep.subr.mxu0 0.0
    %598 = vmatpush1.msra.mxu0 %v279
    %599 = vmatprep.subr.mxu0 0.0
    %600 = vmatpush1.msra.mxu0 %v280
    %601 = vmatprep.subr.mxu0 0.0
    %602 = vmatpush1.msra.mxu0 %v281
    %603 = vmatprep.subr.mxu0 0.0
    %604 = vmatpush1.msra.mxu0 %v282
    %605 = vmatprep.subr.mxu0 0.0
    %606 = vmatpush1.msra.mxu0 %v283
    %607 = vmatprep.subr.mxu0 0.0
    %608 = vmatpush1.msra.mxu0 %v284
    %609 = vmatprep.subr.mxu0 0.0
    %610 = vmatpush1.msra.mxu0 %v285
    %611 = vmatprep.subr.mxu0 0.0
    %612 = vmatpush1.msra.mxu0 %v286
    %613 = vmatprep.subr.mxu0 0.0
    %614 = vmatpush1.msra.mxu0 %v287
    %615 = vmatprep.subr.mxu0 0.0
    %616 = vmatpush1.msra.mxu0 %v288
    %617 = vmatprep.subr.mxu0 0.0
    %618 = vmatpush1.msra.mxu0 %v289
    %619 = vmatprep.subr.mxu0 0.0
    %620 = vmatpush1.msra.mxu0 %v290
    %621 = vmatprep.subr.mxu0 0.0
    %622 = vmatpush1.msra.mxu0 %v291
    %623 = vmatprep.subr.mxu0 0.0
    %624 = vmatpush1.msra.mxu0 %v292
    %625 = vmatprep.subr.mxu0 0.0
    %626 = vmatpush1.msra.mxu0 %v293
    %627 = vmatprep.subr.mxu0 0.0
    %628 = vmatpush1.msra.mxu0 0.0
    %629 = vmatprep.subr.mxu0 0.0
    %630 = vmatpush1.msra.mxu0 0.0
    %631 = vmatprep.subr.mxu0 0.0
    %632 = vmatpush1.msra.mxu0 0.0
    %633 = vmatprep.subr.mxu0 0.0
    %634 = vmatpush1.msra.mxu0 0.0
    %635 = vmatprep.subr.mxu0 0.0
    %636 = vmatpush1.msra.mxu0 0.0
    %637 = vmatprep.subr.mxu0 0.0
    %638 = vmatpush1.msra.mxu0 0.0
    %639 = vmatprep.subr.mxu0 0.0
    %640 = vmatpush1.msra.mxu0 0.0
    %641 = vmatprep.subr.mxu0 0.0
    %642 = vmatpush1.msra.mxu0 0.0
    %643 = vmatprep.subr.mxu0 0.0
    %644 = vmatpush1.msra.mxu0 0.0
    %645 = vmatprep.subr.mxu0 0.0
    %646 = vmatpush1.msra.mxu0 0.0
    %647 = vmatprep.subr.mxu0 0.0
    %648 = vmatpush1.msra.mxu0 0.0
    %649 = vmatprep.subr.mxu0 0.0
    %650 = vmatpush1.msra.mxu0 0.0
    %651 = vmatprep.subr.mxu0 0.0
    %652 = vmatpush1.msra.mxu0 0.0
    %653 = vmatprep.subr.mxu0 0.0
    %654 = vmatpush1.msra.mxu0 0.0
    %655 = vmatprep.subr.mxu0 0.0
    %656 = vmatpush1.msra.mxu0 0.0
    %657 = vmatprep.subr.mxu0 0.0
    %658 = vmatpush1.msra.mxu0 0.0
    %659 = vmatprep.mubr.f32.mxu0 0.0
    %660 = vmatmul.mubr.f32.gmra.mrb[0].mxu0 %v591
    %v661 = vpop.f32.mrb[0].mxu0
    %v662 = vadd.f32 0.0, %v661
    %v663 = vpop.f32.mrb[0].mxu0
    %664 = vdwg.mxu0
    %v665 = vadd.f32 %v594, %v662
    %v666 = vtanh.pop %v665
    %667 = vst [vmem:[%s593] sm:$0xff] %v666
    %s668 = scalar_lea.vmem [#allocation2], 40
    %v669 = vld [vmem:[%s668] sm:$0xff]
    %670 = vmatprep.subr.mxu0 0.0
    %671 = vmatpush1.msra.mxu0 %v278
    %672 = vmatprep.subr.mxu0 0.0
    %673 = vmatpush1.msra.mxu0 %v279
    %674 = vmatprep.subr.mxu0 0.0
    %675 = vmatpush1.msra.mxu0 %v280
    %676 = vmatprep.subr.mxu0 0.0
    %677 = vmatpush1.msra.mxu0 %v281
    %678 = vmatprep.subr.mxu0 0.0
    %679 = vmatpush1.msra.mxu0 %v282
    %680 = vmatprep.subr.mxu0 0.0
    %681 = vmatpush1.msra.mxu0 %v283
    %682 = vmatprep.subr.mxu0 0.0
    %683 = vmatpush1.msra.mxu0 %v284
    %684 = vmatprep.subr.mxu0 0.0
    %685 = vmatpush1.msra.mxu0 %v285
    %686 = vmatprep.subr.mxu0 0.0
    %687 = vmatpush1.msra.mxu0 %v286
    %688 = vmatprep.subr.mxu0 0.0
    %689 = vmatpush1.msra.mxu0 %v287
    %690 = vmatprep.subr.mxu0 0.0
    %691 = vmatpush1.msra.mxu0 %v288
    %692 = vmatprep.subr.mxu0 0.0
    %693 = vmatpush1.msra.mxu0 %v289
    %694 = vmatprep.subr.mxu0 0.0
    %695 = vmatpush1.msra.mxu0 %v290
    %696 = vmatprep.subr.mxu0 0.0
    %697 = vmatpush1.msra.mxu0 %v291
    %698 = vmatprep.subr.mxu0 0.0
    %699 = vmatpush1.msra.mxu0 %v292
    %700 = vmatprep.subr.mxu0 0.0
    %701 = vmatpush1.msra.mxu0 %v293
    %702 = vmatprep.subr.mxu0 0.0
    %703 = vmatpush1.msra.mxu0 0.0
    %704 = vmatprep.subr.mxu0 0.0
    %705 = vmatpush1.msra.mxu0 0.0
    %706 = vmatprep.subr.mxu0 0.0
    %707 = vmatpush1.msra.mxu0 0.0
    %708 = vmatprep.subr.mxu0 0.0
    %709 = vmatpush1.msra.mxu0 0.0
    %710 = vmatprep.subr.mxu0 0.0
    %711 = vmatpush1.msra.mxu0 0.0
    %712 = vmatprep.subr.mxu0 0.0
    %713 = vmatpush1.msra.mxu0 0.0
    %714 = vmatprep.subr.mxu0 0.0
    %715 = vmatpush1.msra.mxu0 0.0
    %716 = vmatprep.subr.mxu0 0.0
    %717 = vmatpush1.msra.mxu0 0.0
    %718 = vmatprep.subr.mxu0 0.0
    %719 = vmatpush1.msra.mxu0 0.0
    %720 = vmatprep.subr.mxu0 0.0
    %721 = vmatpush1.msra.mxu0 0.0
    %722 = vmatprep.subr.mxu0 0.0
    %723 = vmatpush1.msra.mxu0 0.0
    %724 = vmatprep.subr.mxu0 0.0
    %725 = vmatpush1.msra.mxu0 0.0
    %726 = vmatprep.subr.mxu0 0.0
    %727 = vmatpush1.msra.mxu0 0.0
    %728 = vmatprep.subr.mxu0 0.0
    %729 = vmatpush1.msra.mxu0 0.0
    %730 = vmatprep.subr.mxu0 0.0
    %731 = vmatpush1.msra.mxu0 0.0
    %732 = vmatprep.subr.mxu0 0.0
    %733 = vmatpush1.msra.mxu0 0.0
    %734 = vmatprep.mubr.f32.mxu0 0.0
    %735 = vmatmul.mubr.f32.gmra.mrb[0].mxu0 %v666
    %v736 = vpop.f32.mrb[0].mxu0
    %v737 = vadd.f32 0.0, %v736
    %v738 = vpop.f32.mrb[0].mxu0
    %739 = vdwg.mxu0
    %v740 = vadd.f32 %v669, %v737
    %v741 = vtanh.pop %v740
    %742 = vst [vmem:[%s668] sm:$0xff] %v741
    %s743 = scalar_lea.vmem [#allocation2], 48
    %v744 = vld [vmem:[%s743] sm:$0xff]
    %745 = vmatprep.subr.mxu0 0.0
    %746 = vmatpush1.msra.mxu0 %v278
    %747 = vmatprep.subr.mxu0 0.0
    %748 = vmatpush1.msra.mxu0 %v279
    %749 = vmatprep.subr.mxu0 0.0
    %750 = vmatpush1.msra.mxu0 %v280
    %751 = vmatprep.subr.mxu0 0.0
    %752 = vmatpush1.msra.mxu0 %v281
    %753 = vmatprep.subr.mxu0 0.0
    %754 = vmatpush1.msra.mxu0 %v282
    %755 = vmatprep.subr.mxu0 0.0
    %756 = vmatpush1.msra.mxu0 %v283
    %757 = vmatprep.subr.mxu0 0.0
    %758 = vmatpush1.msra.mxu0 %v284
    %759 = vmatprep.subr.mxu0 0.0
    %760 = vmatpush1.msra.mxu0 %v285
    %761 = vmatprep.subr.mxu0 0.0
    %762 = vmatpush1.msra.mxu0 %v286
    %763 = vmatprep.subr.mxu0 0.0
    %764 = vmatpush1.msra.mxu0 %v287
    %765 = vmatprep.subr.mxu0 0.0
    %766 = vmatpush1.msra.mxu0 %v288
    %767 = vmatprep.subr.mxu0 0.0
    %768 = vmatpush1.msra.mxu0 %v289
    %769 = vmatprep.subr.mxu0 0.0
    %770 = vmatpush1.msra.mxu0 %v290
    %771 = vmatprep.subr.mxu0 0.0
    %772 = vmatpush1.msra.mxu0 %v291
    %773 = vmatprep.subr.mxu0 0.0
    %774 = vmatpush1.msra.mxu0 %v292
    %775 = vmatprep.subr.mxu0 0.0
    %776 = vmatpush1.msra.mxu0 %v293
    %777 = vmatprep.subr.mxu0 0.0
    %778 = vmatpush1.msra.mxu0 0.0
    %779 = vmatprep.subr.mxu0 0.0
    %780 = vmatpush1.msra.mxu0 0.0
    %781 = vmatprep.subr.mxu0 0.0
    %782 = vmatpush1.msra.mxu0 0.0
    %783 = vmatprep.subr.mxu0 0.0
    %784 = vmatpush1.msra.mxu0 0.0
    %785 = vmatprep.subr.mxu0 0.0
    %786 = vmatpush1.msra.mxu0 0.0
    %787 = vmatprep.subr.mxu0 0.0
    %788 = vmatpush1.msra.mxu0 0.0
    %789 = vmatprep.subr.mxu0 0.0
    %790 = vmatpush1.msra.mxu0 0.0
    %791 = vmatprep.subr.mxu0 0.0
    %792 = vmatpush1.msra.mxu0 0.0
    %793 = vmatprep.subr.mxu0 0.0
    %794 = vmatpush1.msra.mxu0 0.0
    %795 = vmatprep.subr.mxu0 0.0
    %796 = vmatpush1.msra.mxu0 0.0
    %797 = vmatprep.subr.mxu0 0.0
    %798 = vmatpush1.msra.mxu0 0.0
    %799 = vmatprep.subr.mxu0 0.0
    %800 = vmatpush1.msra.mxu0 0.0
    %801 = vmatprep.subr.mxu0 0.0
    %802 = vmatpush1.msra.mxu0 0.0
    %803 = vmatprep.subr.mxu0 0.0
    %804 = vmatpush1.msra.mxu0 0.0
    %805 = vmatprep.subr.mxu0 0.0
    %806 = vmatpush1.msra.mxu0 0.0
    %807 = vmatprep.subr.mxu0 0.0
    %808 = vmatpush1.msra.mxu0 0.0
    %809 = vmatprep.mubr.f32.mxu0 0.0
    %810 = vmatmul.mubr.f32.gmra.mrb[0].mxu0 %v741
    %v811 = vpop.f32.mrb[0].mxu0
    %v812 = vadd.f32 0.0, %v811
    %v813 = vpop.f32.mrb[0].mxu0
    %814 = vdwg.mxu0
    %v815 = vadd.f32 %v744, %v812
    %v816 = vtanh.pop %v815
    %817 = vst [vmem:[%s743] sm:$0xff] %v816
    %s818 = scalar_lea.vmem [#allocation2], 56
    %v819 = vld [vmem:[%s818] sm:$0xff]
    %820 = vmatprep.subr.mxu0 0.0
    %821 = vmatpush1.msra.mxu0 %v278
    %822 = vmatprep.subr.mxu0 0.0
    %823 = vmatpush1.msra.mxu0 %v279
    %824 = vmatprep.subr.mxu0 0.0
    %825 = vmatpush1.msra.mxu0 %v280
    %826 = vmatprep.subr.mxu0 0.0
    %827 = vmatpush1.msra.mxu0 %v281
    %828 = vmatprep.subr.mxu0 0.0
    %829 = vmatpush1.msra.mxu0 %v282
    %830 = vmatprep.subr.mxu0 0.0
    %831 = vmatpush1.msra.mxu0 %v283
    %832 = vmatprep.subr.mxu0 0.0
    %833 = vmatpush1.msra.mxu0 %v284
    %834 = vmatprep.subr.mxu0 0.0
    %835 = vmatpush1.msra.mxu0 %v285
    %836 = vmatprep.subr.mxu0 0.0
    %837 = vmatpush1.msra.mxu0 %v286
    %838 = vmatprep.subr.mxu0 0.0
    %839 = vmatpush1.msra.mxu0 %v287
    %840 = vmatprep.subr.mxu0 0.0
    %841 = vmatpush1.msra.mxu0 %v288
    %842 = vmatprep.subr.mxu0 0.0
    %843 = vmatpush1.msra.mxu0 %v289
    %844 = vmatprep.subr.mxu0 0.0
    %845 = vmatpush1.msra.mxu0 %v290
    %846 = vmatprep.subr.mxu0 0.0
    %847 = vmatpush1.msra.mxu0 %v291
    %848 = vmatprep.subr.mxu0 0.0
    %849 = vmatpush1.msra.mxu0 %v292
    %850 = vmatprep.subr.mxu0 0.0
    %851 = vmatpush1.msra.mxu0 %v293
    %852 = vmatprep.subr.mxu0 0.0
    %853 = vmatpush1.msra.mxu0 0.0
    %854 = vmatprep.subr.mxu0 0.0
    %855 = vmatpush1.msra.mxu0 0.0
    %856 = vmatprep.subr.mxu0 0.0
    %857 = vmatpush1.msra.mxu0 0.0
    %858 = vmatprep.subr.mxu0 0.0
    %859 = vmatpush1.msra.mxu0 0.0
    %860 = vmatprep.subr.mxu0 0.0
    %861 = vmatpush1.msra.mxu0 0.0
    %862 = vmatprep.subr.mxu0 0.0
    %863 = vmatpush1.msra.mxu0 0.0
    %864 = vmatprep.subr.mxu0 0.0
    %865 = vmatpush1.msra.mxu0 0.0
    %866 = vmatprep.subr.mxu0 0.0
    %867 = vmatpush1.msra.mxu0 0.0
    %868 = vmatprep.subr.mxu0 0.0
    %869 = vmatpush1.msra.mxu0 0.0
    %870 = vmatprep.subr.mxu0 0.0
    %871 = vmatpush1.msra.mxu0 0.0
    %872 = vmatprep.subr.mxu0 0.0
    %873 = vmatpush1.msra.mxu0 0.0
    %874 = vmatprep.subr.mxu0 0.0
    %875 = vmatpush1.msra.mxu0 0.0
    %876 = vmatprep.subr.mxu0 0.0
    %877 = vmatpush1.msra.mxu0 0.0
    %878 = vmatprep.subr.mxu0 0.0
    %879 = vmatpush1.msra.mxu0 0.0
    %880 = vmatprep.subr.mxu0 0.0
    %881 = vmatpush1.msra.mxu0 0.0
    %882 = vmatprep.subr.mxu0 0.0
    %883 = vmatpush1.msra.mxu0 0.0
    %884 = vmatprep.mubr.f32.mxu0 0.0
    %885 = vmatmul.mubr.f32.gmra.mrb[0].mxu0 %v816
    %v886 = vpop.f32.mrb[0].mxu0
    %v887 = vadd.f32 0.0, %v886
    %v888 = vpop.f32.mrb[0].mxu0
    %889 = vdwg.mxu0
    %v890 = vadd.f32 %v819, %v887
    %v891 = vtanh.pop %v890
    %892 = vst [vmem:[%s818] sm:$0xff] %v891
    %v893 = vld [vmem:[#allocation2] sm:$0xff]
    %v894 = vld [vmem:[#allocation2 + $0x8] sm:$0xff]
    %v895 = vld [vmem:[#allocation2 + $0x10] sm:$0xff]
    %v896 = vld [vmem:[#allocation2 + $0x18] sm:$0xff]
    %v897 = vld [vmem:[#allocation2 + $0x20] sm:$0xff]
    %v898 = vld [vmem:[#allocation2 + $0x28] sm:$0xff]
    %v899 = vld [vmem:[#allocation2 + $0x30] sm:$0xff]
    %v900 = vld [vmem:[#allocation2 + $0x38] sm:$0xff]
    %v901 = vld [vmem:[#allocation9] sm:$0xff]
    %v902 = vld [vmem:[#allocation9 + $0x8] sm:$0xff]
    %v903 = vld [vmem:[#allocation9 + $0x10] sm:$0xff]
    %v904 = vld [vmem:[#allocation9 + $0x18] sm:$0xff]
    %v905 = vld [vmem:[#allocation9 + $0x20] sm:$0xff]
    %v906 = vld [vmem:[#allocation9 + $0x28] sm:$0xff]
    %v907 = vld [vmem:[#allocation9 + $0x30] sm:$0xff]
    %v908 = vld [vmem:[#allocation9 + $0x38] sm:$0xff]
    %v909 = vld [vmem:[#allocation9 + $0x40] sm:$0xff]
    %v910 = vld [vmem:[#allocation9 + $0x48] sm:$0xff]
    %v911 = vld [vmem:[#allocation9 + $0x50] sm:$0xff]
    %v912 = vld [vmem:[#allocation9 + $0x58] sm:$0xff]
    %v913 = vld [vmem:[#allocation9 + $0x60] sm:$0xff]
    %v914 = vld [vmem:[#allocation9 + $0x68] sm:$0xff]
    %v915 = vld [vmem:[#allocation9 + $0x70] sm:$0xff]
    %v916 = vld [vmem:[#allocation9 + $0x78] sm:$0xff]
    %v917 = vld [vmem:[%s6] sm:$0x1]
    %v919 = vlaneseq
    %v920 = vshrl.u32 %v919, 7
    %v921 = vsub.s32 0, %v920
    %v922 = vrot.slane %v917, %v921
    %924 = vmatprep.subr.mxu0 0.0
    %925 = vmatpush1.msra.mxu0 %v901
    %926 = vmatprep.subr.mxu0 0.0
    %927 = vmatpush1.msra.mxu0 %v902
    %928 = vmatprep.subr.mxu0 0.0
    %929 = vmatpush1.msra.mxu0 %v903
    %930 = vmatprep.subr.mxu0 0.0
    %931 = vmatpush1.msra.mxu0 %v904
    %932 = vmatprep.subr.mxu0 0.0
    %933 = vmatpush1.msra.mxu0 %v905
    %934 = vmatprep.subr.mxu0 0.0
    %935 = vmatpush1.msra.mxu0 %v906
    %936 = vmatprep.subr.mxu0 0.0
    %937 = vmatpush1.msra.mxu0 %v907
    %938 = vmatprep.subr.mxu0 0.0
    %939 = vmatpush1.msra.mxu0 %v908
    %940 = vmatprep.subr.mxu0 0.0
    %941 = vmatpush1.msra.mxu0 %v909
    %942 = vmatprep.subr.mxu0 0.0
    %943 = vmatpush1.msra.mxu0 %v910
    %944 = vmatprep.subr.mxu0 0.0
    %945 = vmatpush1.msra.mxu0 %v911
    %946 = vmatprep.subr.mxu0 0.0
    %947 = vmatpush1.msra.mxu0 %v912
    %948 = vmatprep.subr.mxu0 0.0
    %949 = vmatpush1.msra.mxu0 %v913
    %950 = vmatprep.subr.mxu0 0.0
    %951 = vmatpush1.msra.mxu0 %v914
    %952 = vmatprep.subr.mxu0 0.0
    %953 = vmatpush1.msra.mxu0 %v915
    %954 = vmatprep.subr.mxu0 0.0
    %955 = vmatpush1.msra.mxu0 %v916
    %956 = vmatprep.subr.mxu0 0.0
    %957 = vmatpush1.msra.mxu0 0.0
    %958 = vmatprep.subr.mxu0 0.0
    %959 = vmatpush1.msra.mxu0 0.0
    %960 = vmatprep.subr.mxu0 0.0
    %961 = vmatpush1.msra.mxu0 0.0
    %962 = vmatprep.subr.mxu0 0.0
    %963 = vmatpush1.msra.mxu0 0.0
    %964 = vmatprep.subr.mxu0 0.0
    %965 = vmatpush1.msra.mxu0 0.0
    %966 = vmatprep.subr.mxu0 0.0
    %967 = vmatpush1.msra.mxu0 0.0
    %968 = vmatprep.subr.mxu0 0.0
    %969 = vmatpush1.msra.mxu0 0.0
    %970 = vmatprep.subr.mxu0 0.0
    %971 = vmatpush1.msra.mxu0 0.0
    %972 = vmatprep.subr.mxu0 0.0
    %973 = vmatpush1.msra.mxu0 0.0
    %974 = vmatprep.subr.mxu0 0.0
    %975 = vmatpush1.msra.mxu0 0.0
    %976 = vmatprep.subr.mxu0 0.0
    %977 = vmatpush1.msra.mxu0 0.0
    %978 = vmatprep.subr.mxu0 0.0
    %979 = vmatpush1.msra.mxu0 0.0
    %980 = vmatprep.subr.mxu0 0.0
    %981 = vmatpush1.msra.mxu0 0.0
    %982 = vmatprep.subr.mxu0 0.0
    %983 = vmatpush1.msra.mxu0 0.0
    %984 = vmatprep.subr.mxu0 0.0
    %985 = vmatpush1.msra.mxu0 0.0
    %986 = vmatprep.subr.mxu0 0.0
    %987 = vmatpush1.msra.mxu0 0.0
    %988 = vmatprep.mubr.f32.mxu0 0.0
    %989 = vmatmul.mubr.f32.gmra.mrb[0].mxu0 %v893
    %v990 = vpop.f32.mrb[0].mxu0
    %v991 = vadd.f32 %v922, %v990
    %v992 = vpop.f32.mrb[0].mxu0
    %993 = vmatprep.mubr.f32.mxu0 0.0
    %994 = vmatmul.mubr.f32.gmra.mrb[0].mxu0 %v894
    %v995 = vpop.f32.mrb[0].mxu0
    %v996 = vadd.f32 %v922, %v995
    %v997 = vpop.f32.mrb[0].mxu0
    %998 = vmatprep.mubr.f32.mxu0 0.0
    %999 = vmatmul.mubr.f32.gmra.mrb[0].mxu0 %v895
    %v1000 = vpop.f32.mrb[0].mxu0
    %v1001 = vadd.f32 %v922, %v1000
    %v1002 = vpop.f32.mrb[0].mxu0
    %1003 = vmatprep.mubr.f32.mxu0 0.0
    %1004 = vmatmul.mubr.f32.gmra.mrb[0].mxu0 %v896
    %v1005 = vpop.f32.mrb[0].mxu0
    %v1006 = vadd.f32 %v922, %v1005
    %v1007 = vpop.f32.mrb[0].mxu0
    %1008 = vmatprep.mubr.f32.mxu0 0.0
    %1009 = vmatmul.mubr.f32.gmra.mrb[0].mxu0 %v897
    %v1010 = vpop.f32.mrb[0].mxu0
    %v1011 = vadd.f32 %v922, %v1010
    %v1012 = vpop.f32.mrb[0].mxu0
    %1013 = vmatprep.mubr.f32.mxu0 0.0
    %1014 = vmatmul.mubr.f32.gmra.mrb[0].mxu0 %v898
    %v1015 = vpop.f32.mrb[0].mxu0
    %v1016 = vadd.f32 %v922, %v1015
    %v1017 = vpop.f32.mrb[0].mxu0
    %1018 = vmatprep.mubr.f32.mxu0 0.0
    %1019 = vmatmul.mubr.f32.gmra.mrb[0].mxu0 %v899
    %v1020 = vpop.f32.mrb[0].mxu0
    %v1021 = vadd.f32 %v922, %v1020
    %v1022 = vpop.f32.mrb[0].mxu0
    %1023 = vmatprep.mubr.f32.mxu0 0.0
    %1024 = vmatmul.mubr.f32.gmra.mrb[0].mxu0 %v900
    %v1025 = vpop.f32.mrb[0].mxu0
    %v1026 = vadd.f32 %v922, %v1025
    %v1027 = vpop.f32.mrb[0].mxu0
    %1028 = vdwg.mxu0
    %1029 = vst [vmem:[#allocation2] sm:$0xff] %v991
    %1030 = vst [vmem:[#allocation2 + $0x8] sm:$0xff] %v996
    %1031 = vst [vmem:[#allocation2 + $0x10] sm:$0xff] %v1001
    %1032 = vst [vmem:[#allocation2 + $0x18] sm:$0xff] %v1006
    %1033 = vst [vmem:[#allocation2 + $0x20] sm:$0xff] %v1011
    %1034 = vst [vmem:[#allocation2 + $0x28] sm:$0xff] %v1016
    %1035 = vst [vmem:[#allocation2 + $0x30] sm:$0xff] %v1021
    %1036 = vst [vmem:[#allocation2 + $0x38] sm:$0xff] %v1026
    %v1037 = vld [vmem:[#allocation11] sm:$0xff]
    %v1038 = vld [vmem:[#allocation11 + $0x8] sm:$0xff]
    %v1039 = vld [vmem:[#allocation11 + $0x10] sm:$0xff]
    %v1040 = vld [vmem:[#allocation11 + $0x18] sm:$0xff]
    %v1041 = vld [vmem:[#allocation11 + $0x20] sm:$0xff]
    %v1042 = vld [vmem:[#allocation11 + $0x28] sm:$0xff]
    %v1043 = vld [vmem:[#allocation11 + $0x30] sm:$0xff]
    %v1044 = vld [vmem:[#allocation11 + $0x38] sm:$0xff]
    %v1045 = vld [vmem:[#allocation11 + $0x40] sm:$0xff]
    %v1046 = vld [vmem:[#allocation11 + $0x48] sm:$0xff]
    %v1047 = vld [vmem:[#allocation11 + $0x50] sm:$0xff]
    %v1048 = vld [vmem:[#allocation11 + $0x58] sm:$0xff]
    %v1049 = vld [vmem:[#allocation11 + $0x60] sm:$0xff]
    %v1050 = vld [vmem:[#allocation11 + $0x68] sm:$0xff]
    %v1051 = vld [vmem:[#allocation11 + $0x70] sm:$0xff]
    %v1052 = vld [vmem:[#allocation11 + $0x78] sm:$0xff]
    %v1053 = vld [vmem:[#allocation2] sm:$0xff]
    %1054 = vmatprep.subr.mxu0 0.0
    %1055 = vmatpush1.msra.mxu0 %v1037
    %1056 = vmatprep.subr.mxu0 0.0
    %1057 = vmatpush1.msra.mxu0 %v1038
    %1058 = vmatprep.subr.mxu0 0.0
    %1059 = vmatpush1.msra.mxu0 %v1039
    %1060 = vmatprep.subr.mxu0 0.0
    %1061 = vmatpush1.msra.mxu0 %v1040
    %1062 = vmatprep.subr.mxu0 0.0
    %1063 = vmatpush1.msra.mxu0 %v1041
    %1064 = vmatprep.subr.mxu0 0.0
    %1065 = vmatpush1.msra.mxu0 %v1042
    %1066 = vmatprep.subr.mxu0 0.0
    %1067 = vmatpush1.msra.mxu0 %v1043
    %1068 = vmatprep.subr.mxu0 0.0
    %1069 = vmatpush1.msra.mxu0 %v1044
    %1070 = vmatprep.subr.mxu0 0.0
    %1071 = vmatpush1.msra.mxu0 %v1045
    %1072 = vmatprep.subr.mxu0 0.0
    %1073 = vmatpush1.msra.mxu0 %v1046
    %1074 = vmatprep.subr.mxu0 0.0
    %1075 = vmatpush1.msra.mxu0 %v1047
    %1076 = vmatprep.subr.mxu0 0.0
    %1077 = vmatpush1.msra.mxu0 %v1048
    %1078 = vmatprep.subr.mxu0 0.0
    %1079 = vmatpush1.msra.mxu0 %v1049
    %1080 = vmatprep.subr.mxu0 0.0
    %1081 = vmatpush1.msra.mxu0 %v1050
    %1082 = vmatprep.subr.mxu0 0.0
    %1083 = vmatpush1.msra.mxu0 %v1051
    %1084 = vmatprep.subr.mxu0 0.0
    %1085 = vmatpush1.msra.mxu0 %v1052
    %1086 = vmatprep.subr.mxu0 0.0
    %1087 = vmatpush1.msra.mxu0 0.0
    %1088 = vmatprep.subr.mxu0 0.0
    %1089 = vmatpush1.msra.mxu0 0.0
    %1090 = vmatprep.subr.mxu0 0.0
    %1091 = vmatpush1.msra.mxu0 0.0
    %1092 = vmatprep.subr.mxu0 0.0
    %1093 = vmatpush1.msra.mxu0 0.0
    %1094 = vmatprep.subr.mxu0 0.0
    %1095 = vmatpush1.msra.mxu0 0.0
    %1096 = vmatprep.subr.mxu0 0.0
    %1097 = vmatpush1.msra.mxu0 0.0
    %1098 = vmatprep.subr.mxu0 0.0
    %1099 = vmatpush1.msra.mxu0 0.0
    %1100 = vmatprep.subr.mxu0 0.0
    %1101 = vmatpush1.msra.mxu0 0.0
    %1102 = vmatprep.subr.mxu0 0.0
    %1103 = vmatpush1.msra.mxu0 0.0
    %1104 = vmatprep.subr.mxu0 0.0
    %1105 = vmatpush1.msra.mxu0 0.0
    %1106 = vmatprep.subr.mxu0 0.0
    %1107 = vmatpush1.msra.mxu0 0.0
    %1108 = vmatprep.subr.mxu0 0.0
    %1109 = vmatpush1.msra.mxu0 0.0
    %1110 = vmatprep.subr.mxu0 0.0
    %1111 = vmatpush1.msra.mxu0 0.0
    %1112 = vmatprep.subr.mxu0 0.0
    %1113 = vmatpush1.msra.mxu0 0.0
    %1114 = vmatprep.subr.mxu0 0.0
    %1115 = vmatpush1.msra.mxu0 0.0
    %1116 = vmatprep.subr.mxu0 0.0
    %1117 = vmatpush1.msra.mxu0 0.0
    %1118 = vmatprep.mubr.f32.mxu0 0.0
    %1119 = vmatmul.mubr.f32.gmra.mrb[0].mxu0 0.0
    %v1120 = vpop.f32.mrb[0].mxu0
    %v1121 = vadd.f32 0.0, %v1120
    %v1122 = vpop.f32.mrb[0].mxu0
    %1123 = vdwg.mxu0
    %v1124 = vadd.f32 %v1053, %v1121
    %v1125 = vtanh.pop %v1124
    %1126 = vst [vmem:[#allocation2] sm:$0xff] %v1125
    %v1127 = vld [vmem:[%s368] sm:$0xff]
    %1128 = vmatprep.subr.mxu0 0.0
    %1129 = vmatpush1.msra.mxu0 %v1037
    %1130 = vmatprep.subr.mxu0 0.0
    %1131 = vmatpush1.msra.mxu0 %v1038
    %1132 = vmatprep.subr.mxu0 0.0
    %1133 = vmatpush1.msra.mxu0 %v1039
    %1134 = vmatprep.subr.mxu0 0.0
    %1135 = vmatpush1.msra.mxu0 %v1040
    %1136 = vmatprep.subr.mxu0 0.0
    %1137 = vmatpush1.msra.mxu0 %v1041
    %1138 = vmatprep.subr.mxu0 0.0
    %1139 = vmatpush1.msra.mxu0 %v1042
    %1140 = vmatprep.subr.mxu0 0.0
    %1141 = vmatpush1.msra.mxu0 %v1043
    %1142 = vmatprep.subr.mxu0 0.0
    %1143 = vmatpush1.msra.mxu0 %v1044
    %1144 = vmatprep.subr.mxu0 0.0
    %1145 = vmatpush1.msra.mxu0 %v1045
    %1146 = vmatprep.subr.mxu0 0.0
    %1147 = vmatpush1.msra.mxu0 %v1046
    %1148 = vmatprep.subr.mxu0 0.0
    %1149 = vmatpush1.msra.mxu0 %v1047
    %1150 = vmatprep.subr.mxu0 0.0
    %1151 = vmatpush1.msra.mxu0 %v1048
    %1152 = vmatprep.subr.mxu0 0.0
    %1153 = vmatpush1.msra.mxu0 %v1049
    %1154 = vmatprep.subr.mxu0 0.0
    %1155 = vmatpush1.msra.mxu0 %v1050
    %1156 = vmatprep.subr.mxu0 0.0
    %1157 = vmatpush1.msra.mxu0 %v1051
    %1158 = vmatprep.subr.mxu0 0.0
    %1159 = vmatpush1.msra.mxu0 %v1052
    %1160 = vmatprep.subr.mxu0 0.0
    %1161 = vmatpush1.msra.mxu0 0.0
    %1162 = vmatprep.subr.mxu0 0.0
    %1163 = vmatpush1.msra.mxu0 0.0
    %1164 = vmatprep.subr.mxu0 0.0
    %1165 = vmatpush1.msra.mxu0 0.0
    %1166 = vmatprep.subr.mxu0 0.0
    %1167 = vmatpush1.msra.mxu0 0.0
    %1168 = vmatprep.subr.mxu0 0.0
    %1169 = vmatpush1.msra.mxu0 0.0
    %1170 = vmatprep.subr.mxu0 0.0
    %1171 = vmatpush1.msra.mxu0 0.0
    %1172 = vmatprep.subr.mxu0 0.0
    %1173 = vmatpush1.msra.mxu0 0.0
    %1174 = vmatprep.subr.mxu0 0.0
    %1175 = vmatpush1.msra.mxu0 0.0
    %1176 = vmatprep.subr.mxu0 0.0
    %1177 = vmatpush1.msra.mxu0 0.0
    %1178 = vmatprep.subr.mxu0 0.0
    %1179 = vmatpush1.msra.mxu0 0.0
    %1180 = vmatprep.subr.mxu0 0.0
    %1181 = vmatpush1.msra.mxu0 0.0
    %1182 = vmatprep.subr.mxu0 0.0
    %1183 = vmatpush1.msra.mxu0 0.0
    %1184 = vmatprep.subr.mxu0 0.0
    %1185 = vmatpush1.msra.mxu0 0.0
    %1186 = vmatprep.subr.mxu0 0.0
    %1187 = vmatpush1.msra.mxu0 0.0
    %1188 = vmatprep.subr.mxu0 0.0
    %1189 = vmatpush1.msra.mxu0 0.0
    %1190 = vmatprep.subr.mxu0 0.0
    %1191 = vmatpush1.msra.mxu0 0.0
    %1192 = vmatprep.mubr.f32.mxu0 0.0
    %1193 = vmatmul.mubr.f32.gmra.mrb[0].mxu0 %v1125
    %v1194 = vpop.f32.mrb[0].mxu0
    %v1195 = vadd.f32 0.0, %v1194
    %v1196 = vpop.f32.mrb[0].mxu0
    %1197 = vdwg.mxu0
    %v1198 = vadd.f32 %v1127, %v1195
    %v1199 = vtanh.pop %v1198
    %1200 = vst [vmem:[%s368] sm:$0xff] %v1199
    %v1201 = vld [vmem:[%s443] sm:$0xff]
    %1202 = vmatprep.subr.mxu0 0.0
    %1203 = vmatpush1.msra.mxu0 %v1037
    %1204 = vmatprep.subr.mxu0 0.0
    %1205 = vmatpush1.msra.mxu0 %v1038
    %1206 = vmatprep.subr.mxu0 0.0
    %1207 = vmatpush1.msra.mxu0 %v1039
    %1208 = vmatprep.subr.mxu0 0.0
    %1209 = vmatpush1.msra.mxu0 %v1040
    %1210 = vmatprep.subr.mxu0 0.0
    %1211 = vmatpush1.msra.mxu0 %v1041
    %1212 = vmatprep.subr.mxu0 0.0
    %1213 = vmatpush1.msra.mxu0 %v1042
    %1214 = vmatprep.subr.mxu0 0.0
    %1215 = vmatpush1.msra.mxu0 %v1043
    %1216 = vmatprep.subr.mxu0 0.0
    %1217 = vmatpush1.msra.mxu0 %v1044
    %1218 = vmatprep.subr.mxu0 0.0
    %1219 = vmatpush1.msra.mxu0 %v1045
    %1220 = vmatprep.subr.mxu0 0.0
    %1221 = vmatpush1.msra.mxu0 %v1046
    %1222 = vmatprep.subr.mxu0 0.0
    %1223 = vmatpush1.msra.mxu0 %v1047
    %1224 = vmatprep.subr.mxu0 0.0
    %1225 = vmatpush1.msra.mxu0 %v1048
    %1226 = vmatprep.subr.mxu0 0.0
    %1227 = vmatpush1.msra.mxu0 %v1049
    %1228 = vmatprep.subr.mxu0 0.0
    %1229 = vmatpush1.msra.mxu0 %v1050
    %1230 = vmatprep.subr.mxu0 0.0
    %1231 = vmatpush1.msra.mxu0 %v1051
    %1232 = vmatprep.subr.mxu0 0.0
    %1233 = vmatpush1.msra.mxu0 %v1052
    %1234 = vmatprep.subr.mxu0 0.0
    %1235 = vmatpush1.msra.mxu0 0.0
    %1236 = vmatprep.subr.mxu0 0.0
    %1237 = vmatpush1.msra.mxu0 0.0
    %1238 = vmatprep.subr.mxu0 0.0
    %1239 = vmatpush1.msra.mxu0 0.0
    %1240 = vmatprep.subr.mxu0 0.0
    %1241 = vmatpush1.msra.mxu0 0.0
    %1242 = vmatprep.subr.mxu0 0.0
    %1243 = vmatpush1.msra.mxu0 0.0
    %1244 = vmatprep.subr.mxu0 0.0
    %1245 = vmatpush1.msra.mxu0 0.0
    %1246 = vmatprep.subr.mxu0 0.0
    %1247 = vmatpush1.msra.mxu0 0.0
    %1248 = vmatprep.subr.mxu0 0.0
    %1249 = vmatpush1.msra.mxu0 0.0
    %1250 = vmatprep.subr.mxu0 0.0
    %1251 = vmatpush1.msra.mxu0 0.0
    %1252 = vmatprep.subr.mxu0 0.0
    %1253 = vmatpush1.msra.mxu0 0.0
    %1254 = vmatprep.subr.mxu0 0.0
    %1255 = vmatpush1.msra.mxu0 0.0
    %1256 = vmatprep.subr.mxu0 0.0
    %1257 = vmatpush1.msra.mxu0 0.0
    %1258 = vmatprep.subr.mxu0 0.0
    %1259 = vmatpush1.msra.mxu0 0.0
    %1260 = vmatprep.subr.mxu0 0.0
    %1261 = vmatpush1.msra.mxu0 0.0
    %1262 = vmatprep.subr.mxu0 0.0
    %1263 = vmatpush1.msra.mxu0 0.0
    %1264 = vmatprep.subr.mxu0 0.0
    %1265 = vmatpush1.msra.mxu0 0.0
    %1266 = vmatprep.mubr.f32.mxu0 0.0
    %1267 = vmatmul.mubr.f32.gmra.mrb[0].mxu0 %v1199
    %v1268 = vpop.f32.mrb[0].mxu0
    %v1269 = vadd.f32 0.0, %v1268
    %v1270 = vpop.f32.mrb[0].mxu0
    %1271 = vdwg.mxu0
    %v1272 = vadd.f32 %v1201, %v1269
    %v1273 = vtanh.pop %v1272
    %1274 = vst [vmem:[%s443] sm:$0xff] %v1273
    %v1275 = vld [vmem:[%s518] sm:$0xff]
    %1276 = vmatprep.subr.mxu0 0.0
    %1277 = vmatpush1.msra.mxu0 %v1037
    %1278 = vmatprep.subr.mxu0 0.0
    %1279 = vmatpush1.msra.mxu0 %v1038
    %1280 = vmatprep.subr.mxu0 0.0
    %1281 = vmatpush1.msra.mxu0 %v1039
    %1282 = vmatprep.subr.mxu0 0.0
    %1283 = vmatpush1.msra.mxu0 %v1040
    %1284 = vmatprep.subr.mxu0 0.0
    %1285 = vmatpush1.msra.mxu0 %v1041
    %1286 = vmatprep.subr.mxu0 0.0
    %1287 = vmatpush1.msra.mxu0 %v1042
    %1288 = vmatprep.subr.mxu0 0.0
    %1289 = vmatpush1.msra.mxu0 %v1043
    %1290 = vmatprep.subr.mxu0 0.0
    %1291 = vmatpush1.msra.mxu0 %v1044
    %1292 = vmatprep.subr.mxu0 0.0
    %1293 = vmatpush1.msra.mxu0 %v1045
    %1294 = vmatprep.subr.mxu0 0.0
    %1295 = vmatpush1.msra.mxu0 %v1046
    %1296 = vmatprep.subr.mxu0 0.0
    %1297 = vmatpush1.msra.mxu0 %v1047
    %1298 = vmatprep.subr.mxu0 0.0
    %1299 = vmatpush1.msra.mxu0 %v1048
    %1300 = vmatprep.subr.mxu0 0.0
    %1301 = vmatpush1.msra.mxu0 %v1049
    %1302 = vmatprep.subr.mxu0 0.0
    %1303 = vmatpush1.msra.mxu0 %v1050
    %1304 = vmatprep.subr.mxu0 0.0
    %1305 = vmatpush1.msra.mxu0 %v1051
    %1306 = vmatprep.subr.mxu0 0.0
    %1307 = vmatpush1.msra.mxu0 %v1052
    %1308 = vmatprep.subr.mxu0 0.0
    %1309 = vmatpush1.msra.mxu0 0.0
    %1310 = vmatprep.subr.mxu0 0.0
    %1311 = vmatpush1.msra.mxu0 0.0
    %1312 = vmatprep.subr.mxu0 0.0
    %1313 = vmatpush1.msra.mxu0 0.0
    %1314 = vmatprep.subr.mxu0 0.0
    %1315 = vmatpush1.msra.mxu0 0.0
    %1316 = vmatprep.subr.mxu0 0.0
    %1317 = vmatpush1.msra.mxu0 0.0
    %1318 = vmatprep.subr.mxu0 0.0
    %1319 = vmatpush1.msra.mxu0 0.0
    %1320 = vmatprep.subr.mxu0 0.0
    %1321 = vmatpush1.msra.mxu0 0.0
    %1322 = vmatprep.subr.mxu0 0.0
    %1323 = vmatpush1.msra.mxu0 0.0
    %1324 = vmatprep.subr.mxu0 0.0
    %1325 = vmatpush1.msra.mxu0 0.0
    %1326 = vmatprep.subr.mxu0 0.0
    %1327 = vmatpush1.msra.mxu0 0.0
    %1328 = vmatprep.subr.mxu0 0.0
    %1329 = vmatpush1.msra.mxu0 0.0
    %1330 = vmatprep.subr.mxu0 0.0
    %1331 = vmatpush1.msra.mxu0 0.0
    %1332 = vmatprep.subr.mxu0 0.0
    %1333 = vmatpush1.msra.mxu0 0.0
    %1334 = vmatprep.subr.mxu0 0.0
    %1335 = vmatpush1.msra.mxu0 0.0
    %1336 = vmatprep.subr.mxu0 0.0
    %1337 = vmatpush1.msra.mxu0 0.0
    %1338 = vmatprep.subr.mxu0 0.0
    %1339 = vmatpush1.msra.mxu0 0.0
    %1340 = vmatprep.mubr.f32.mxu0 0.0
    %1341 = vmatmul.mubr.f32.gmra.mrb[0].mxu0 %v1273
    %v1342 = vpop.f32.mrb[0].mxu0
    %v1343 = vadd.f32 0.0, %v1342
    %v1344 = vpop.f32.mrb[0].mxu0
    %1345 = vdwg.mxu0
    %v1346 = vadd.f32 %v1275, %v1343
    %v1347 = vtanh.pop %v1346
    %1348 = vst [vmem:[%s518] sm:$0xff] %v1347
    %v1349 = vld [vmem:[%s593] sm:$0xff]
    %1350 = vmatprep.subr.mxu0 0.0
    %1351 = vmatpush1.msra.mxu0 %v1037
    %1352 = vmatprep.subr.mxu0 0.0
    %1353 = vmatpush1.msra.mxu0 %v1038
    %1354 = vmatprep.subr.mxu0 0.0
    %1355 = vmatpush1.msra.mxu0 %v1039
    %1356 = vmatprep.subr.mxu0 0.0
    %1357 = vmatpush1.msra.mxu0 %v1040
    %1358 = vmatprep.subr.mxu0 0.0
    %1359 = vmatpush1.msra.mxu0 %v1041
    %1360 = vmatprep.subr.mxu0 0.0
    %1361 = vmatpush1.msra.mxu0 %v1042
    %1362 = vmatprep.subr.mxu0 0.0
    %1363 = vmatpush1.msra.mxu0 %v1043
    %1364 = vmatprep.subr.mxu0 0.0
    %1365 = vmatpush1.msra.mxu0 %v1044
    %1366 = vmatprep.subr.mxu0 0.0
    %1367 = vmatpush1.msra.mxu0 %v1045
    %1368 = vmatprep.subr.mxu0 0.0
    %1369 = vmatpush1.msra.mxu0 %v1046
    %1370 = vmatprep.subr.mxu0 0.0
    %1371 = vmatpush1.msra.mxu0 %v1047
    %1372 = vmatprep.subr.mxu0 0.0
    %1373 = vmatpush1.msra.mxu0 %v1048
    %1374 = vmatprep.subr.mxu0 0.0
    %1375 = vmatpush1.msra.mxu0 %v1049
    %1376 = vmatprep.subr.mxu0 0.0
    %1377 = vmatpush1.msra.mxu0 %v1050
    %1378 = vmatprep.subr.mxu0 0.0
    %1379 = vmatpush1.msra.mxu0 %v1051
    %1380 = vmatprep.subr.mxu0 0.0
    %1381 = vmatpush1.msra.mxu0 %v1052
    %1382 = vmatprep.subr.mxu0 0.0
    %1383 = vmatpush1.msra.mxu0 0.0
    %1384 = vmatprep.subr.mxu0 0.0
    %1385 = vmatpush1.msra.mxu0 0.0
    %1386 = vmatprep.subr.mxu0 0.0
    %1387 = vmatpush1.msra.mxu0 0.0
    %1388 = vmatprep.subr.mxu0 0.0
    %1389 = vmatpush1.msra.mxu0 0.0
    %1390 = vmatprep.subr.mxu0 0.0
    %1391 = vmatpush1.msra.mxu0 0.0
    %1392 = vmatprep.subr.mxu0 0.0
    %1393 = vmatpush1.msra.mxu0 0.0
    %1394 = vmatprep.subr.mxu0 0.0
    %1395 = vmatpush1.msra.mxu0 0.0
    %1396 = vmatprep.subr.mxu0 0.0
    %1397 = vmatpush1.msra.mxu0 0.0
    %1398 = vmatprep.subr.mxu0 0.0
    %1399 = vmatpush1.msra.mxu0 0.0
    %1400 = vmatprep.subr.mxu0 0.0
    %1401 = vmatpush1.msra.mxu0 0.0
    %1402 = vmatprep.subr.mxu0 0.0
    %1403 = vmatpush1.msra.mxu0 0.0
    %1404 = vmatprep.subr.mxu0 0.0
    %1405 = vmatpush1.msra.mxu0 0.0
    %1406 = vmatprep.subr.mxu0 0.0
    %1407 = vmatpush1.msra.mxu0 0.0
    %1408 = vmatprep.subr.mxu0 0.0
    %1409 = vmatpush1.msra.mxu0 0.0
    %1410 = vmatprep.subr.mxu0 0.0
    %1411 = vmatpush1.msra.mxu0 0.0
    %1412 = vmatprep.subr.mxu0 0.0
    %1413 = vmatpush1.msra.mxu0 0.0
    %1414 = vmatprep.mubr.f32.mxu0 0.0
    %1415 = vmatmul.mubr.f32.gmra.mrb[0].mxu0 %v1347
    %v1416 = vpop.f32.mrb[0].mxu0
    %v1417 = vadd.f32 0.0, %v1416
    %v1418 = vpop.f32.mrb[0].mxu0
    %1419 = vdwg.mxu0
    %v1420 = vadd.f32 %v1349, %v1417
    %v1421 = vtanh.pop %v1420
    %1422 = vst [vmem:[%s593] sm:$0xff] %v1421
    %v1423 = vld [vmem:[%s668] sm:$0xff]
    %1424 = vmatprep.subr.mxu0 0.0
    %1425 = vmatpush1.msra.mxu0 %v1037
    %1426 = vmatprep.subr.mxu0 0.0
    %1427 = vmatpush1.msra.mxu0 %v1038
    %1428 = vmatprep.subr.mxu0 0.0
    %1429 = vmatpush1.msra.mxu0 %v1039
    %1430 = vmatprep.subr.mxu0 0.0
    %1431 = vmatpush1.msra.mxu0 %v1040
    %1432 = vmatprep.subr.mxu0 0.0
    %1433 = vmatpush1.msra.mxu0 %v1041
    %1434 = vmatprep.subr.mxu0 0.0
    %1435 = vmatpush1.msra.mxu0 %v1042
    %1436 = vmatprep.subr.mxu0 0.0
    %1437 = vmatpush1.msra.mxu0 %v1043
    %1438 = vmatprep.subr.mxu0 0.0
    %1439 = vmatpush1.msra.mxu0 %v1044
    %1440 = vmatprep.subr.mxu0 0.0
    %1441 = vmatpush1.msra.mxu0 %v1045
    %1442 = vmatprep.subr.mxu0 0.0
    %1443 = vmatpush1.msra.mxu0 %v1046
    %1444 = vmatprep.subr.mxu0 0.0
    %1445 = vmatpush1.msra.mxu0 %v1047
    %1446 = vmatprep.subr.mxu0 0.0
    %1447 = vmatpush1.msra.mxu0 %v1048
    %1448 = vmatprep.subr.mxu0 0.0
    %1449 = vmatpush1.msra.mxu0 %v1049
    %1450 = vmatprep.subr.mxu0 0.0
    %1451 = vmatpush1.msra.mxu0 %v1050
    %1452 = vmatprep.subr.mxu0 0.0
    %1453 = vmatpush1.msra.mxu0 %v1051
    %1454 = vmatprep.subr.mxu0 0.0
    %1455 = vmatpush1.msra.mxu0 %v1052
    %1456 = vmatprep.subr.mxu0 0.0
    %1457 = vmatpush1.msra.mxu0 0.0
    %1458 = vmatprep.subr.mxu0 0.0
    %1459 = vmatpush1.msra.mxu0 0.0
    %1460 = vmatprep.subr.mxu0 0.0
    %1461 = vmatpush1.msra.mxu0 0.0
    %1462 = vmatprep.subr.mxu0 0.0
    %1463 = vmatpush1.msra.mxu0 0.0
    %1464 = vmatprep.subr.mxu0 0.0
    %1465 = vmatpush1.msra.mxu0 0.0
    %1466 = vmatprep.subr.mxu0 0.0
    %1467 = vmatpush1.msra.mxu0 0.0
    %1468 = vmatprep.subr.mxu0 0.0
    %1469 = vmatpush1.msra.mxu0 0.0
    %1470 = vmatprep.subr.mxu0 0.0
    %1471 = vmatpush1.msra.mxu0 0.0
    %1472 = vmatprep.subr.mxu0 0.0
    %1473 = vmatpush1.msra.mxu0 0.0
    %1474 = vmatprep.subr.mxu0 0.0
    %1475 = vmatpush1.msra.mxu0 0.0
    %1476 = vmatprep.subr.mxu0 0.0
    %1477 = vmatpush1.msra.mxu0 0.0
    %1478 = vmatprep.subr.mxu0 0.0
    %1479 = vmatpush1.msra.mxu0 0.0
    %1480 = vmatprep.subr.mxu0 0.0
    %1481 = vmatpush1.msra.mxu0 0.0
    %1482 = vmatprep.subr.mxu0 0.0
    %1483 = vmatpush1.msra.mxu0 0.0
    %1484 = vmatprep.subr.mxu0 0.0
    %1485 = vmatpush1.msra.mxu0 0.0
    %1486 = vmatprep.subr.mxu0 0.0
    %1487 = vmatpush1.msra.mxu0 0.0
    %1488 = vmatprep.mubr.f32.mxu0 0.0
    %1489 = vmatmul.mubr.f32.gmra.mrb[0].mxu0 %v1421
    %v1490 = vpop.f32.mrb[0].mxu0
    %v1491 = vadd.f32 0.0, %v1490
    %v1492 = vpop.f32.mrb[0].mxu0
    %1493 = vdwg.mxu0
    %v1494 = vadd.f32 %v1423, %v1491
    %v1495 = vtanh.pop %v1494
    %1496 = vst [vmem:[%s668] sm:$0xff] %v1495
    %v1497 = vld [vmem:[%s743] sm:$0xff]
    %1498 = vmatprep.subr.mxu0 0.0
    %1499 = vmatpush1.msra.mxu0 %v1037
    %1500 = vmatprep.subr.mxu0 0.0
    %1501 = vmatpush1.msra.mxu0 %v1038
    %1502 = vmatprep.subr.mxu0 0.0
    %1503 = vmatpush1.msra.mxu0 %v1039
    %1504 = vmatprep.subr.mxu0 0.0
    %1505 = vmatpush1.msra.mxu0 %v1040
    %1506 = vmatprep.subr.mxu0 0.0
    %1507 = vmatpush1.msra.mxu0 %v1041
    %1508 = vmatprep.subr.mxu0 0.0
    %1509 = vmatpush1.msra.mxu0 %v1042
    %1510 = vmatprep.subr.mxu0 0.0
    %1511 = vmatpush1.msra.mxu0 %v1043
    %1512 = vmatprep.subr.mxu0 0.0
    %1513 = vmatpush1.msra.mxu0 %v1044
    %1514 = vmatprep.subr.mxu0 0.0
    %1515 = vmatpush1.msra.mxu0 %v1045
    %1516 = vmatprep.subr.mxu0 0.0
    %1517 = vmatpush1.msra.mxu0 %v1046
    %1518 = vmatprep.subr.mxu0 0.0
    %1519 = vmatpush1.msra.mxu0 %v1047
    %1520 = vmatprep.subr.mxu0 0.0
    %1521 = vmatpush1.msra.mxu0 %v1048
    %1522 = vmatprep.subr.mxu0 0.0
    %1523 = vmatpush1.msra.mxu0 %v1049
    %1524 = vmatprep.subr.mxu0 0.0
    %1525 = vmatpush1.msra.mxu0 %v1050
    %1526 = vmatprep.subr.mxu0 0.0
    %1527 = vmatpush1.msra.mxu0 %v1051
    %1528 = vmatprep.subr.mxu0 0.0
    %1529 = vmatpush1.msra.mxu0 %v1052
    %1530 = vmatprep.subr.mxu0 0.0
    %1531 = vmatpush1.msra.mxu0 0.0
    %1532 = vmatprep.subr.mxu0 0.0
    %1533 = vmatpush1.msra.mxu0 0.0
    %1534 = vmatprep.subr.mxu0 0.0
    %1535 = vmatpush1.msra.mxu0 0.0
    %1536 = vmatprep.subr.mxu0 0.0
    %1537 = vmatpush1.msra.mxu0 0.0
    %1538 = vmatprep.subr.mxu0 0.0
    %1539 = vmatpush1.msra.mxu0 0.0
    %1540 = vmatprep.subr.mxu0 0.0
    %1541 = vmatpush1.msra.mxu0 0.0
    %1542 = vmatprep.subr.mxu0 0.0
    %1543 = vmatpush1.msra.mxu0 0.0
    %1544 = vmatprep.subr.mxu0 0.0
    %1545 = vmatpush1.msra.mxu0 0.0
    %1546 = vmatprep.subr.mxu0 0.0
    %1547 = vmatpush1.msra.mxu0 0.0
    %1548 = vmatprep.subr.mxu0 0.0
    %1549 = vmatpush1.msra.mxu0 0.0
    %1550 = vmatprep.subr.mxu0 0.0
    %1551 = vmatpush1.msra.mxu0 0.0
    %1552 = vmatprep.subr.mxu0 0.0
    %1553 = vmatpush1.msra.mxu0 0.0
    %1554 = vmatprep.subr.mxu0 0.0
    %1555 = vmatpush1.msra.mxu0 0.0
    %1556 = vmatprep.subr.mxu0 0.0
    %1557 = vmatpush1.msra.mxu0 0.0
    %1558 = vmatprep.subr.mxu0 0.0
    %1559 = vmatpush1.msra.mxu0 0.0
    %1560 = vmatprep.subr.mxu0 0.0
    %1561 = vmatpush1.msra.mxu0 0.0
    %1562 = vmatprep.mubr.f32.mxu0 0.0
    %1563 = vmatmul.mubr.f32.gmra.mrb[0].mxu0 %v1495
    %v1564 = vpop.f32.mrb[0].mxu0
    %v1565 = vadd.f32 0.0, %v1564
    %v1566 = vpop.f32.mrb[0].mxu0
    %1567 = vdwg.mxu0
    %v1568 = vadd.f32 %v1497, %v1565
    %v1569 = vtanh.pop %v1568
    %1570 = vst [vmem:[%s743] sm:$0xff] %v1569
    %v1571 = vld [vmem:[%s818] sm:$0xff]
    %1572 = vmatprep.subr.mxu0 0.0
    %1573 = vmatpush1.msra.mxu0 %v1037
    %1574 = vmatprep.subr.mxu0 0.0
    %1575 = vmatpush1.msra.mxu0 %v1038
    %1576 = vmatprep.subr.mxu0 0.0
    %1577 = vmatpush1.msra.mxu0 %v1039
    %1578 = vmatprep.subr.mxu0 0.0
    %1579 = vmatpush1.msra.mxu0 %v1040
    %1580 = vmatprep.subr.mxu0 0.0
    %1581 = vmatpush1.msra.mxu0 %v1041
    %1582 = vmatprep.subr.mxu0 0.0
    %1583 = vmatpush1.msra.mxu0 %v1042
    %1584 = vmatprep.subr.mxu0 0.0
    %1585 = vmatpush1.msra.mxu0 %v1043
    %1586 = vmatprep.subr.mxu0 0.0
    %1587 = vmatpush1.msra.mxu0 %v1044
    %1588 = vmatprep.subr.mxu0 0.0
    %1589 = vmatpush1.msra.mxu0 %v1045
    %1590 = vmatprep.subr.mxu0 0.0
    %1591 = vmatpush1.msra.mxu0 %v1046
    %1592 = vmatprep.subr.mxu0 0.0
    %1593 = vmatpush1.msra.mxu0 %v1047
    %1594 = vmatprep.subr.mxu0 0.0
    %1595 = vmatpush1.msra.mxu0 %v1048
    %1596 = vmatprep.subr.mxu0 0.0
    %1597 = vmatpush1.msra.mxu0 %v1049
    %1598 = vmatprep.subr.mxu0 0.0
    %1599 = vmatpush1.msra.mxu0 %v1050
    %1600 = vmatprep.subr.mxu0 0.0
    %1601 = vmatpush1.msra.mxu0 %v1051
    %1602 = vmatprep.subr.mxu0 0.0
    %1603 = vmatpush1.msra.mxu0 %v1052
    %1604 = vmatprep.subr.mxu0 0.0
    %1605 = vmatpush1.msra.mxu0 0.0
    %1606 = vmatprep.subr.mxu0 0.0
    %1607 = vmatpush1.msra.mxu0 0.0
    %1608 = vmatprep.subr.mxu0 0.0
    %1609 = vmatpush1.msra.mxu0 0.0
    %1610 = vmatprep.subr.mxu0 0.0
    %1611 = vmatpush1.msra.mxu0 0.0
    %1612 = vmatprep.subr.mxu0 0.0
    %1613 = vmatpush1.msra.mxu0 0.0
    %1614 = vmatprep.subr.mxu0 0.0
    %1615 = vmatpush1.msra.mxu0 0.0
    %1616 = vmatprep.subr.mxu0 0.0
    %1617 = vmatpush1.msra.mxu0 0.0
    %1618 = vmatprep.subr.mxu0 0.0
    %1619 = vmatpush1.msra.mxu0 0.0
    %1620 = vmatprep.subr.mxu0 0.0
    %1621 = vmatpush1.msra.mxu0 0.0
    %1622 = vmatprep.subr.mxu0 0.0
    %1623 = vmatpush1.msra.mxu0 0.0
    %1624 = vmatprep.subr.mxu0 0.0
    %1625 = vmatpush1.msra.mxu0 0.0
    %1626 = vmatprep.subr.mxu0 0.0
    %1627 = vmatpush1.msra.mxu0 0.0
    %1628 = vmatprep.subr.mxu0 0.0
    %1629 = vmatpush1.msra.mxu0 0.0
    %1630 = vmatprep.subr.mxu0 0.0
    %1631 = vmatpush1.msra.mxu0 0.0
    %1632 = vmatprep.subr.mxu0 0.0
    %1633 = vmatpush1.msra.mxu0 0.0
    %1634 = vmatprep.subr.mxu0 0.0
    %1635 = vmatpush1.msra.mxu0 0.0
    %1636 = vmatprep.mubr.f32.mxu0 0.0
    %1637 = vmatmul.mubr.f32.gmra.mrb[0].mxu0 %v1569
    %v1638 = vpop.f32.mrb[0].mxu0
    %v1639 = vadd.f32 0.0, %v1638
    %v1640 = vpop.f32.mrb[0].mxu0
    %1641 = vdwg.mxu0
    %v1642 = vadd.f32 %v1571, %v1639
    %v1643 = vtanh.pop %v1642
    %1644 = vst [vmem:[%s818] sm:$0xff] %v1643
    %v1645 = vld [vmem:[#allocation2] sm:$0xff]
    %v1646 = vld [vmem:[#allocation2 + $0x8] sm:$0xff]
    %v1647 = vld [vmem:[#allocation2 + $0x10] sm:$0xff]
    %v1648 = vld [vmem:[#allocation2 + $0x18] sm:$0xff]
    %v1649 = vld [vmem:[#allocation2 + $0x20] sm:$0xff]
    %v1650 = vld [vmem:[#allocation2 + $0x28] sm:$0xff]
    %v1651 = vld [vmem:[#allocation2 + $0x30] sm:$0xff]
    %v1652 = vld [vmem:[#allocation2 + $0x38] sm:$0xff]
    %v1653 = vld [vmem:[#allocation12] sm:$0xff]
    %v1654 = vld [vmem:[#allocation12 + $0x8] sm:$0xff]
    %v1655 = vld [vmem:[#allocation12 + $0x10] sm:$0xff]
    %v1656 = vld [vmem:[#allocation12 + $0x18] sm:$0xff]
    %v1657 = vld [vmem:[#allocation12 + $0x20] sm:$0xff]
    %v1658 = vld [vmem:[#allocation12 + $0x28] sm:$0xff]
    %v1659 = vld [vmem:[#allocation12 + $0x30] sm:$0xff]
    %v1660 = vld [vmem:[#allocation12 + $0x38] sm:$0xff]
    %v1661 = vld [vmem:[#allocation12 + $0x40] sm:$0xff]
    %v1662 = vld [vmem:[#allocation12 + $0x48] sm:$0xff]
    %v1663 = vld [vmem:[#allocation12 + $0x50] sm:$0xff]
    %v1664 = vld [vmem:[#allocation12 + $0x58] sm:$0xff]
    %v1665 = vld [vmem:[#allocation12 + $0x60] sm:$0xff]
    %v1666 = vld [vmem:[#allocation12 + $0x68] sm:$0xff]
    %v1667 = vld [vmem:[#allocation12 + $0x70] sm:$0xff]
    %v1668 = vld [vmem:[#allocation12 + $0x78] sm:$0xff]
    %v1669 = vld [vmem:[%s8] sm:$0x1]
    %v1671 = vlaneseq
    %v1672 = vshrl.u32 %v1671, 7
    %v1673 = vsub.s32 0, %v1672
    %v1674 = vrot.slane %v1669, %v1673
    %1676 = vmatprep.subr.mxu0 0.0
    %1677 = vmatpush1.msra.mxu0 %v1653
    %1678 = vmatprep.subr.mxu0 0.0
    %1679 = vmatpush1.msra.mxu0 %v1654
    %1680 = vmatprep.subr.mxu0 0.0
    %1681 = vmatpush1.msra.mxu0 %v1655
    %1682 = vmatprep.subr.mxu0 0.0
    %1683 = vmatpush1.msra.mxu0 %v1656
    %1684 = vmatprep.subr.mxu0 0.0
    %1685 = vmatpush1.msra.mxu0 %v1657
    %1686 = vmatprep.subr.mxu0 0.0
    %1687 = vmatpush1.msra.mxu0 %v1658
    %1688 = vmatprep.subr.mxu0 0.0
    %1689 = vmatpush1.msra.mxu0 %v1659
    %1690 = vmatprep.subr.mxu0 0.0
    %1691 = vmatpush1.msra.mxu0 %v1660
    %1692 = vmatprep.subr.mxu0 0.0
    %1693 = vmatpush1.msra.mxu0 %v1661
    %1694 = vmatprep.subr.mxu0 0.0
    %1695 = vmatpush1.msra.mxu0 %v1662
    %1696 = vmatprep.subr.mxu0 0.0
    %1697 = vmatpush1.msra.mxu0 %v1663
    %1698 = vmatprep.subr.mxu0 0.0
    %1699 = vmatpush1.msra.mxu0 %v1664
    %1700 = vmatprep.subr.mxu0 0.0
    %1701 = vmatpush1.msra.mxu0 %v1665
    %1702 = vmatprep.subr.mxu0 0.0
    %1703 = vmatpush1.msra.mxu0 %v1666
    %1704 = vmatprep.subr.mxu0 0.0
    %1705 = vmatpush1.msra.mxu0 %v1667
    %1706 = vmatprep.subr.mxu0 0.0
    %1707 = vmatpush1.msra.mxu0 %v1668
    %1708 = vmatprep.subr.mxu0 0.0
    %1709 = vmatpush1.msra.mxu0 0.0
    %1710 = vmatprep.subr.mxu0 0.0
    %1711 = vmatpush1.msra.mxu0 0.0
    %1712 = vmatprep.subr.mxu0 0.0
    %1713 = vmatpush1.msra.mxu0 0.0
    %1714 = vmatprep.subr.mxu0 0.0
    %1715 = vmatpush1.msra.mxu0 0.0
    %1716 = vmatprep.subr.mxu0 0.0
    %1717 = vmatpush1.msra.mxu0 0.0
    %1718 = vmatprep.subr.mxu0 0.0
    %1719 = vmatpush1.msra.mxu0 0.0
    %1720 = vmatprep.subr.mxu0 0.0
    %1721 = vmatpush1.msra.mxu0 0.0
    %1722 = vmatprep.subr.mxu0 0.0
    %1723 = vmatpush1.msra.mxu0 0.0
    %1724 = vmatprep.subr.mxu0 0.0
    %1725 = vmatpush1.msra.mxu0 0.0
    %1726 = vmatprep.subr.mxu0 0.0
    %1727 = vmatpush1.msra.mxu0 0.0
    %1728 = vmatprep.subr.mxu0 0.0
    %1729 = vmatpush1.msra.mxu0 0.0
    %1730 = vmatprep.subr.mxu0 0.0
    %1731 = vmatpush1.msra.mxu0 0.0
    %1732 = vmatprep.subr.mxu0 0.0
    %1733 = vmatpush1.msra.mxu0 0.0
    %1734 = vmatprep.subr.mxu0 0.0
    %1735 = vmatpush1.msra.mxu0 0.0
    %1736 = vmatprep.subr.mxu0 0.0
    %1737 = vmatpush1.msra.mxu0 0.0
    %1738 = vmatprep.subr.mxu0 0.0
    %1739 = vmatpush1.msra.mxu0 0.0
    %1740 = vmatprep.mubr.f32.mxu0 0.0
    %1741 = vmatmul.mubr.f32.gmra.mrb[0].mxu0 %v1645
    %v1742 = vpop.f32.mrb[0].mxu0
    %v1743 = vadd.f32 %v1674, %v1742
    %v1744 = vpop.f32.mrb[0].mxu0
    %1745 = vmatprep.mubr.f32.mxu0 0.0
    %1746 = vmatmul.mubr.f32.gmra.mrb[0].mxu0 %v1646
    %v1747 = vpop.f32.mrb[0].mxu0
    %v1748 = vadd.f32 %v1674, %v1747
    %v1749 = vpop.f32.mrb[0].mxu0
    %1750 = vmatprep.mubr.f32.mxu0 0.0
    %1751 = vmatmul.mubr.f32.gmra.mrb[0].mxu0 %v1647
    %v1752 = vpop.f32.mrb[0].mxu0
    %v1753 = vadd.f32 %v1674, %v1752
    %v1754 = vpop.f32.mrb[0].mxu0
    %1755 = vmatprep.mubr.f32.mxu0 0.0
    %1756 = vmatmul.mubr.f32.gmra.mrb[0].mxu0 %v1648
    %v1757 = vpop.f32.mrb[0].mxu0
    %v1758 = vadd.f32 %v1674, %v1757
    %v1759 = vpop.f32.mrb[0].mxu0
    %1760 = vmatprep.mubr.f32.mxu0 0.0
    %1761 = vmatmul.mubr.f32.gmra.mrb[0].mxu0 %v1649
    %v1762 = vpop.f32.mrb[0].mxu0
    %v1763 = vadd.f32 %v1674, %v1762
    %v1764 = vpop.f32.mrb[0].mxu0
    %1765 = vmatprep.mubr.f32.mxu0 0.0
    %1766 = vmatmul.mubr.f32.gmra.mrb[0].mxu0 %v1650
    %v1767 = vpop.f32.mrb[0].mxu0
    %v1768 = vadd.f32 %v1674, %v1767
    %v1769 = vpop.f32.mrb[0].mxu0
    %1770 = vmatprep.mubr.f32.mxu0 0.0
    %1771 = vmatmul.mubr.f32.gmra.mrb[0].mxu0 %v1651
    %v1772 = vpop.f32.mrb[0].mxu0
    %v1773 = vadd.f32 %v1674, %v1772
    %v1774 = vpop.f32.mrb[0].mxu0
    %1775 = vmatprep.mubr.f32.mxu0 0.0
    %1776 = vmatmul.mubr.f32.gmra.mrb[0].mxu0 %v1652
    %v1777 = vpop.f32.mrb[0].mxu0
    %v1778 = vadd.f32 %v1674, %v1777
    %v1779 = vpop.f32.mrb[0].mxu0
    %1780 = vdwg.mxu0
    %v1781 = vmax.f32 %v1743, 0.0
    %v1782 = vmax.f32 %v1748, 0.0
    %v1783 = vmax.f32 %v1753, 0.0
    %v1784 = vmax.f32 %v1758, 0.0
    %v1785 = vmax.f32 %v1763, 0.0
    %v1786 = vmax.f32 %v1768, 0.0
    %v1787 = vmax.f32 %v1773, 0.0
    %v1788 = vmax.f32 %v1778, 0.0
    %v1789 = vld [vmem:[#allocation14] sm:$0xff]
    %v1790 = vld [vmem:[#allocation14 + $0x8] sm:$0xff]
    %v1791 = vld [vmem:[#allocation14 + $0x10] sm:$0xff]
    %v1792 = vld [vmem:[#allocation14 + $0x18] sm:$0xff]
    %v1793 = vld [vmem:[#allocation14 + $0x20] sm:$0xff]
    %v1794 = vld [vmem:[#allocation14 + $0x28] sm:$0xff]
    %v1795 = vld [vmem:[#allocation14 + $0x30] sm:$0xff]
    %v1796 = vld [vmem:[#allocation14 + $0x38] sm:$0xff]
    %v1797 = vld [vmem:[#allocation14 + $0x40] sm:$0xff]
    %v1798 = vld [vmem:[#allocation14 + $0x48] sm:$0xff]
    %v1799 = vld [vmem:[#allocation14 + $0x50] sm:$0xff]
    %v1800 = vld [vmem:[#allocation14 + $0x58] sm:$0xff]
    %v1801 = vld [vmem:[#allocation14 + $0x60] sm:$0xff]
    %v1802 = vld [vmem:[#allocation14 + $0x68] sm:$0xff]
    %v1803 = vld [vmem:[#allocation14 + $0x70] sm:$0xff]
    %v1804 = vld [vmem:[#allocation14 + $0x78] sm:$0xff]
    %v1805 = vld [vmem:[%s10] sm:$0x1]
    %v1807 = vlaneseq
    %v1808 = vshrl.u32 %v1807, 7
    %v1809 = vsub.s32 0, %v1808
    %v1810 = vrot.slane %v1805, %v1809
    %1812 = vmatprep.subr.mxu0 0.0
    %1813 = vmatpush1.msra.mxu0 %v1789
    %1814 = vmatprep.subr.mxu0 0.0
    %1815 = vmatpush1.msra.mxu0 %v1790
    %1816 = vmatprep.subr.mxu0 0.0
    %1817 = vmatpush1.msra.mxu0 %v1791
    %1818 = vmatprep.subr.mxu0 0.0
    %1819 = vmatpush1.msra.mxu0 %v1792
    %1820 = vmatprep.subr.mxu0 0.0
    %1821 = vmatpush1.msra.mxu0 %v1793
    %1822 = vmatprep.subr.mxu0 0.0
    %1823 = vmatpush1.msra.mxu0 %v1794
    %1824 = vmatprep.subr.mxu0 0.0
    %1825 = vmatpush1.msra.mxu0 %v1795
    %1826 = vmatprep.subr.mxu0 0.0
    %1827 = vmatpush1.msra.mxu0 %v1796
    %1828 = vmatprep.subr.mxu0 0.0
    %1829 = vmatpush1.msra.mxu0 %v1797
    %1830 = vmatprep.subr.mxu0 0.0
    %1831 = vmatpush1.msra.mxu0 %v1798
    %1832 = vmatprep.subr.mxu0 0.0
    %1833 = vmatpush1.msra.mxu0 %v1799
    %1834 = vmatprep.subr.mxu0 0.0
    %1835 = vmatpush1.msra.mxu0 %v1800
    %1836 = vmatprep.subr.mxu0 0.0
    %1837 = vmatpush1.msra.mxu0 %v1801
    %1838 = vmatprep.subr.mxu0 0.0
    %1839 = vmatpush1.msra.mxu0 %v1802
    %1840 = vmatprep.subr.mxu0 0.0
    %1841 = vmatpush1.msra.mxu0 %v1803
    %1842 = vmatprep.subr.mxu0 0.0
    %1843 = vmatpush1.msra.mxu0 %v1804
    %1844 = vmatprep.subr.mxu0 0.0
    %1845 = vmatpush1.msra.mxu0 0.0
    %1846 = vmatprep.subr.mxu0 0.0
    %1847 = vmatpush1.msra.mxu0 0.0
    %1848 = vmatprep.subr.mxu0 0.0
    %1849 = vmatpush1.msra.mxu0 0.0
    %1850 = vmatprep.subr.mxu0 0.0
    %1851 = vmatpush1.msra.mxu0 0.0
    %1852 = vmatprep.subr.mxu0 0.0
    %1853 = vmatpush1.msra.mxu0 0.0
    %1854 = vmatprep.subr.mxu0 0.0
    %1855 = vmatpush1.msra.mxu0 0.0
    %1856 = vmatprep.subr.mxu0 0.0
    %1857 = vmatpush1.msra.mxu0 0.0
    %1858 = vmatprep.subr.mxu0 0.0
    %1859 = vmatpush1.msra.mxu0 0.0
    %1860 = vmatprep.subr.mxu0 0.0
    %1861 = vmatpush1.msra.mxu0 0.0
    %1862 = vmatprep.subr.mxu0 0.0
    %1863 = vmatpush1.msra.mxu0 0.0
    %1864 = vmatprep.subr.mxu0 0.0
    %1865 = vmatpush1.msra.mxu0 0.0
    %1866 = vmatprep.subr.mxu0 0.0
    %1867 = vmatpush1.msra.mxu0 0.0
    %1868 = vmatprep.subr.mxu0 0.0
    %1869 = vmatpush1.msra.mxu0 0.0
    %1870 = vmatprep.subr.mxu0 0.0
    %1871 = vmatpush1.msra.mxu0 0.0
    %1872 = vmatprep.subr.mxu0 0.0
    %1873 = vmatpush1.msra.mxu0 0.0
    %1874 = vmatprep.subr.mxu0 0.0
    %1875 = vmatpush1.msra.mxu0 0.0
    %1876 = vmatprep.mubr.f32.mxu0 0.0
    %1877 = vmatmul.mubr.f32.gmra.mrb[0].mxu0 %v1781
    %v1878 = vpop.f32.mrb[0].mxu0
    %v1879 = vadd.f32 %v1810, %v1878
    %v1880 = vpop.f32.mrb[0].mxu0
    %1881 = vmatprep.mubr.f32.mxu0 0.0
    %1882 = vmatmul.mubr.f32.gmra.mrb[0].mxu0 %v1782
    %v1883 = vpop.f32.mrb[0].mxu0
    %v1884 = vadd.f32 %v1810, %v1883
    %v1885 = vpop.f32.mrb[0].mxu0
    %1886 = vmatprep.mubr.f32.mxu0 0.0
    %1887 = vmatmul.mubr.f32.gmra.mrb[0].mxu0 %v1783
    %v1888 = vpop.f32.mrb[0].mxu0
    %v1889 = vadd.f32 %v1810, %v1888
    %v1890 = vpop.f32.mrb[0].mxu0
    %1891 = vmatprep.mubr.f32.mxu0 0.0
    %1892 = vmatmul.mubr.f32.gmra.mrb[0].mxu0 %v1784
    %v1893 = vpop.f32.mrb[0].mxu0
    %v1894 = vadd.f32 %v1810, %v1893
    %v1895 = vpop.f32.mrb[0].mxu0
    %1896 = vmatprep.mubr.f32.mxu0 0.0
    %1897 = vmatmul.mubr.f32.gmra.mrb[0].mxu0 %v1785
    %v1898 = vpop.f32.mrb[0].mxu0
    %v1899 = vadd.f32 %v1810, %v1898
    %v1900 = vpop.f32.mrb[0].mxu0
    %1901 = vmatprep.mubr.f32.mxu0 0.0
    %1902 = vmatmul.mubr.f32.gmra.mrb[0].mxu0 %v1786
    %v1903 = vpop.f32.mrb[0].mxu0
    %v1904 = vadd.f32 %v1810, %v1903
    %v1905 = vpop.f32.mrb[0].mxu0
    %1906 = vmatprep.mubr.f32.mxu0 0.0
    %1907 = vmatmul.mubr.f32.gmra.mrb[0].mxu0 %v1787
    %v1908 = vpop.f32.mrb[0].mxu0
    %v1909 = vadd.f32 %v1810, %v1908
    %v1910 = vpop.f32.mrb[0].mxu0
    %1911 = vmatprep.mubr.f32.mxu0 0.0
    %1912 = vmatmul.mubr.f32.gmra.mrb[0].mxu0 %v1788
    %v1913 = vpop.f32.mrb[0].mxu0
    %v1914 = vadd.f32 %v1810, %v1913
    %v1915 = vpop.f32.mrb[0].mxu0
    %1916 = vdwg.mxu0
    %1917 = vst [vmem:[#allocation15] sm:$0xff] %v1879
    %1918 = vst [vmem:[#allocation15 + $0x8] sm:$0xff] %v1884
    %1919 = vst [vmem:[#allocation15 + $0x10] sm:$0xff] %v1889
    %1920 = vst [vmem:[#allocation15 + $0x18] sm:$0xff] %v1894
    %1921 = vst [vmem:[#allocation15 + $0x20] sm:$0xff] %v1899
    %1922 = vst [vmem:[#allocation15 + $0x28] sm:$0xff] %v1904
    %1923 = vst [vmem:[#allocation15 + $0x30] sm:$0xff] %v1909
    %1924 = vst [vmem:[#allocation15 + $0x38] sm:$0xff] %v1914
    // Predicated region
    $region74: #{tpu_custom_call.1} parent=1 // pred_check
      _
    $region75: #{tpu_custom_call.1} parent=1 // pred_check_branch
      %1926 = sbr.rel (0) target = $region77
    $region76: #{tpu_custom_call.1} parent=1 // pred_region
      %s1928 = ssub.s32 1024, 1024
      %1929 = vsyncadd [#allocation5], %s1928
      %s1930 = sshll.u32 [#allocation15], 4
      %s1931 = int_to_ptr.vmem [resolvable:$true] %s1930
      %1936 = dma.vmem_to_hbm [thread:$0]  %s1931, 1024, %s11, [#allocation5], 128, 128, 8
    $region77: #{tpu_custom_call.1} parent=1 // pred_fallthru
      _
    // Predicated region
    $region78: #{tpu_custom_call.1} parent=1 // pred_check
      _
    $region79: #{tpu_custom_call.1} parent=1 // pred_check_branch
      %1938 = sbr.rel (0) target = $region81
    $region80: #{tpu_custom_call.1} parent=1 // pred_region
      %1939 = dma.done [#allocation5], 1024
    $region81: #{tpu_custom_call.1} parent=1 // pred_fallthru
      _
    %1940 = vsyncpa [#allocation4], 1
    %1941 = vsyncpa [#allocation7], 1
    %1942 = vsyncpa [#allocation10], 1
    %1943 = vsyncpa [#allocation13], 1
    %1944 = vsyncpa [#allocation5], 1

</llo_original>
